<compile_context>
chip_gen: v7x
topology: tpu7x:2x2x1
jax: 0.10.0
libtpu: 0.0.40
codegen_flags: <defaults>
</compile_context>

<pallas_src>
import functools

import jax
import jax.numpy as jnp
from jax import lax
from jax.experimental import pallas as pl
from jax.experimental.pallas import tpu as pltpu

LANE = 128
MIN_TILE = LANE * 8  # 1024: keeps tile_rows % 8 == 0 whenever the grid has > 1 step


# ----------------------------------------------------------------------------
# Kernel helpers
# ----------------------------------------------------------------------------
def _bce_with_logits(x, y):
    # Numerically stable BCE-with-logits (matches PyTorch):
    #   loss = max(x, 0) - x*y + log(1 + exp(-|x|))
    return jnp.maximum(x, 0.0) - x * y + jnp.log1p(jnp.exp(-jnp.abs(x)))


def _lane_dense_row_ids(step, tile_b, tile_rows):
    # Batch index of element (sublane r, lane l) of this step's lane-dense tile.
    sub = lax.broadcasted_iota(jnp.int32, (tile_rows, LANE), 0)
    lane = lax.broadcasted_iota(jnp.int32, (tile_rows, LANE), 1)
    return step * tile_b + sub * LANE + lane


# ----------------------------------------------------------------------------
# Streaming kernel: pre-gathered (tile_b, D) embedding rows streamed from HBM.
# Each grid step is independent and writes its own partial-sum output block.
# ----------------------------------------------------------------------------
def _skipgram_stream_kernel(inp_ref, ctx_ref, lbl_ref, out_ref, *,
                            tile_b, tile_rows, total_b, need_mask):
    a = inp_ref[...].astype(jnp.float32)                        # (tile_b, D)
    b = ctx_ref[...].astype(jnp.float32)                        # (tile_b, D)
    prod = a * b
    # Lane-dense logits: (tile_rows, 128) instead of lane-sparse (tile_b, 1).
    x = jnp.sum(prod.reshape(tile_rows, LANE, -1), axis=-1)     # (tile_rows, 128)
    per = _bce_with_logits(x, lbl_ref[...])                     # (tile_rows, 128)
    if need_mask:
        rows = _lane_dense_row_ids(pl.program_id(0), tile_b, tile_rows)
        per = jnp.where(rows < total_b, per, 0.0)
    out_ref[...] = jnp.sum(per).reshape(1, 1, 1)                # per-step partial sum


# ----------------------------------------------------------------------------
# Fused-gather kernel (small vocab): tables live in VMEM for the whole grid,
# rows are gathered via a one-hot matmul on the MXU; HBM traffic per step is
# only the index / label blocks.
# ----------------------------------------------------------------------------
def _skipgram_fused_kernel(cen_ref, ctx_ref, lbl_ref, tin_ref, tout_ref, out_ref, *,
                           tile_b, tile_rows, total_b, vocab, need_mask, precision):
    iota_v = lax.broadcasted_iota(jnp.int32, (tile_b, vocab), 1)
    onehot_c = (cen_ref[...] == iota_v).astype(tin_ref.dtype)   # (tile_b, V)
    onehot_x = (ctx_ref[...] == iota_v).astype(tout_ref.dtype)  # (tile_b, V)
    a = jnp.dot(onehot_c, tin_ref[...],
                preferred_element_type=jnp.float32, precision=precision)
    b = jnp.dot(onehot_x, tout_ref[...],
                preferred_element_type=jnp.float32, precision=precision)
    prod = a * b
    x = jnp.sum(prod.reshape(tile_rows, LANE, -1), axis=-1)     # (tile_rows, 128)
    per = _bce_with_logits(x, lbl_ref[...])
    if need_mask:
        rows = _lane_dense_row_ids(pl.program_id(0), tile_b, tile_rows)
        per = jnp.where(rows < total_b, per, 0.0)
    out_ref[...] = jnp.sum(per).reshape(1, 1, 1)


# ----------------------------------------------------------------------------
# Wrapper
# ----------------------------------------------------------------------------
def _round_up(x, m):
    return (x + m - 1) // m * m


def _vmem_caps():
    """(physical VMEM per core, safe vmem_limit clamp); conservative fallback."""
    phys = 64 << 20
    try:
        phys = int(getattr(pltpu.get_tpu_info(), "vmem_capacity_bytes", phys))
    except Exception:
        pass
    if phys > (64 << 20):          # v5e / v6e: 128 MiB physical per core
        return phys, 100 << 20
    return phys, 44 << 20          # v7x-class (64 MiB) or unknown: leave headroom


def skipgram_fast_loss(input_emb, output_emb, center_words, context_words, labels, *,
                       max_tile_b=4096, embed_dtype=None, fuse_gather=None,
                       fused_precision=None, vmem_budget_bytes=None):
    """Forward pass of SkipGramFast (mean BCE-with-logits over the batch)."""
    V, D = input_emb.shape
    B = int(center_words.shape[0])
    assert D % LANE == 0, "embedding_dim must be a multiple of 128 (lane width)"

    dtype = jnp.dtype(embed_dtype) if embed_dtype is not None else jnp.dtype(input_emb.dtype)
    itemsize = dtype.itemsize

    _, vmem_clamp = _vmem_caps()
    budget = int(vmem_budget_bytes) if vmem_budget_bytes is not None else vmem_clamp

    # Fused (resident-table, one-hot MXU gather) path only pays for small vocab.
    table_resident = 2 * 2 * V * D * itemsize     # 2 tables x pipeline double-buffer
    if fuse_gather is None:
        fuse_gather = (V <= 1024) and (table_resident <= budget // 2)

    # ---- per-row VMEM footprint (double-buffered), lane padding accounted ----
    if fuse_gather:
        per_row = (2 * 2 * LANE * 4    # (tile_b, 1) index blocks lane-pad to 128 lanes
                   + 2 * 4             # lane-dense labels
                   + 2 * V * 4         # one-hot intermediates (f32 live/spill)
                   + 4 * D * 4)        # gathered rows + product temporaries
        fixed = table_resident + (2 << 20)
    else:
        per_row = 2 * 2 * D * itemsize + 2 * 4
        fixed = 2 << 20

    cap_rows = max(MIN_TILE, max(budget - fixed, 0) // per_row)
    target = min(int(max_tile_b), int(cap_rows))
    target = max(MIN_TILE, (target // MIN_TILE) * MIN_TILE)

    # ---- tile / grid selection ----------------------------------------------
    B_lane = _round_up(B, LANE)
    if B_lane <= MIN_TILE:
        tile_b = B_lane                                   # single full-array tile
    elif B_lane <= target:
        # Whole batch fits one tile; split in two so both v7x TensorCores get work.
        tile_b = _round_up((B_lane + 1) // 2, MIN_TILE) if B_lane >= 2 * MIN_TILE else B_lane
    else:
        n_tiles = -(-B_lane // target)                    # even-ish split -> less padding
        tile_b = _round_up(-(-B_lane // n_tiles), MIN_TILE)
    B_pad = _round_up(B_lane, tile_b)
    G = B_pad // tile_b
    tile_rows = tile_b // LANE
    need_mask = (B_pad != B)

    est_vmem = fixed + tile_b * per_row
    vmem_limit = int(min(vmem_clamp, max(32 << 20, int(est_vmem * 1.5) + (8 << 20))))
    cparams = pltpu.CompilerParams(
        dimension_semantics=("parallel",),   # independent batch chunks (both TCs on v7x)
        vmem_limit_bytes=vmem_limit,
    )

    # Lane-dense labels: element (r, l) of row-block i is batch item i*tile_b + r*128 + l.
    lbl = (jnp.zeros((B_pad,), jnp.float32).at[:B].set(labels.astype(jnp.float32))
           .reshape(B_pad // LANE, LANE))
    lbl_spec = pl.BlockSpec((tile_rows, LANE), lambda i: (i, 0))

    out_shape = jax.ShapeDtypeStruct((G, 1, 1), jnp.float32)
    out_spec = pl.BlockSpec((1, 1, 1), lambda i: (i, 0, 0))

    if fuse_gather:
        cen = jnp.zeros((B_pad, 1), jnp.int32).at[:B, 0].set(center_words.astype(jnp.int32))
        ctx = jnp.zeros((B_pad, 1), jnp.int32).at[:B, 0].set(context_words.astype(jnp.int32))
        t_in = input_emb.astype(dtype)
        t_out = output_emb.astype(dtype)
        kernel = functools.partial(_skipgram_fused_kernel, tile_b=tile_b,
                                   tile_rows=tile_rows, total_b=B, vocab=V,
                                   need_mask=need_mask, precision=fused_precision)
        partials = pl.pallas_call(
            kernel,
            out_shape=out_shape,
            grid_spec=pltpu.PrefetchScalarGridSpec(
                num_scalar_prefetch=0,
                grid=(G,),
                in_specs=[
                    pl.BlockSpec((tile_b, 1), lambda i: (i, 0)),   # center indices
                    pl.BlockSpec((tile_b, 1), lambda i: (i, 0)),   # context indices
                    lbl_spec,                                      # labels (lane-dense)
                    pl.BlockSpec((V, D), lambda i: (0, 0)),        # resident input table
                    pl.BlockSpec((V, D), lambda i: (0, 0)),        # resident output table
                ],
                out_specs=out_spec,
            ),
            compiler_params=cparams,
        )(cen, ctx, lbl, t_in, t_out)
    else:
        # General-vocab path: gather in XLA, stream big tiles through the kernel.
        inp = input_emb[center_words].astype(dtype)
        ctx_e = output_emb[context_words].astype(dtype)
        if B_pad != B:
            pad = ((0, B_pad - B), (0, 0))
            inp = jnp.pad(inp, pad)
            ctx_e = jnp.pad(ctx_e, pad)
        kernel = functools.partial(_skipgram_stream_kernel, tile_b=tile_b,
                                   tile_rows=tile_rows, total_b=B, need_mask=need_mask)
        partials = pl.pallas_call(
            kernel,
            out_shape=out_shape,
            grid_spec=pltpu.PrefetchScalarGridSpec(
                num_scalar_prefetch=0,
                grid=(G,),
                in_specs=[
                    pl.BlockSpec((tile_b, D), lambda i: (i, 0)),   # center embeds
                    pl.BlockSpec((tile_b, D), lambda i: (i, 0)),   # context embeds
                    lbl_spec,                                      # labels (lane-dense)
                ],
                out_specs=out_spec,
            ),
            compiler_params=cparams,
        )(inp, ctx_e, lbl)

    # Tiny epilogue reduction + mean in JAX (G scalars).
    return jnp.sum(partials) / B


def init_skipgram_params(vocab_size, embedding_dim, key):
    """Deterministic init matching nn.init.uniform_(-0.5/D, 0.5/D)."""
    k1, k2 = jax.random.split(key)
    bound = 0.5 / embedding_dim
    input_emb = jax.random.uniform(
        k1, (vocab_size, embedding_dim), jnp.float32, -bound, bound)
    output_emb = jax.random.uniform(
        k2, (vocab_size, embedding_dim), jnp.float32, -bound, bound)
    return input_emb, output_emb


if __name__ == "__main__":
    vocab_size = 64
    embedding_dim = 128
    batch = 300   # not a multiple of 128 -> exercises padding + lane-dense mask

    key = jax.random.PRNGKey(0)
    kp, kc, kx, kl = jax.random.split(key, 4)

    input_emb, output_emb = init_skipgram_params(vocab_size, embedding_dim, kp)
    center_words = jax.random.randint(kc, (batch,), 0, vocab_size, dtype=jnp.int32)
    context_words = jax.random.randint(kx, (batch,), 0, vocab_size, dtype=jnp.int32)
    labels = jax.random.bernoulli(kl, 0.5, (batch,)).astype(jnp.float32)

    # Pure-JAX reference (matches the PyTorch forward).
    inp = input_emb[center_words]
    out = output_emb[context_words]
    logits = jnp.sum(inp * out, axis=1)
    ref = jnp.mean(jnp.maximum(logits, 0.0) - logits * labels
                   + jnp.log1p(jnp.exp(-jnp.abs(logits))))

    # Fused-gather path (vocab tables resident in VMEM, MXU one-hot gather).
    loss_fused = skipgram_fast_loss(input_emb, output_emb,
                                    center_words, context_words, labels,
                                    fuse_gather=True)
    # Streaming path (general vocab: XLA gather + big lane-dense streaming kernel).
    loss_stream = skipgram_fast_loss(input_emb, output_emb,
                                     center_words, context_words, labels,
                                     fuse_gather=False)
    # Streaming path with bf16 transfer dtype (halves kernel-side HBM read).
    loss_bf16 = skipgram_fast_loss(input_emb, output_emb,
                                   center_words, context_words, labels,
                                   fuse_gather=False, embed_dtype=jnp.bfloat16)
    jax.block_until_ready((loss_fused, loss_stream, loss_bf16))

    assert jnp.allclose(loss_stream, ref, atol=1e-5, rtol=1e-5), (loss_stream, ref)
    # MXU f32 one-hot gather carries slightly more rounding than the VPU path.
    assert jnp.allclose(loss_fused, ref, atol=2e-5, rtol=1e-4), (loss_fused, ref)
    assert jnp.allclose(loss_bf16, ref, atol=1e-3, rtol=2e-2), (loss_bf16, ref)

    print("KERNEL_OK")
</pallas_src>

<mosaic_0001>
module attributes {stable_mosaic.version = 11 : i64} {
  func.func @_skipgram_fused_kernel(%arg0: i32, %arg1: memref<384x1xi32, #tpu.memory_space<vmem>>, %arg2: memref<384x1xi32, #tpu.memory_space<vmem>>, %arg3: memref<3x128xf32, #tpu.memory_space<vmem>>, %arg4: memref<64x128xf32, #tpu.memory_space<vmem>>, %arg5: memref<64x128xf32, #tpu.memory_space<vmem>>, %arg6: memref<1x1x1xf32, #tpu.memory_space<vmem>>) attributes {dimension_semantics = [#tpu.dimension_semantics<parallel>], iteration_bounds = array<i64: 1>, scalar_prefetch = 0 : i64, scratch_operands = 0 : i64, tpu.core_type = #tpu.core_type<tc>, window_params = [{transform_indices = @transform_0, window_bounds = array<i64: 384, 1>}, {transform_indices = @transform_1, window_bounds = array<i64: 384, 1>}, {transform_indices = @transform_2, window_bounds = array<i64: 3, 128>}, {pipeline_mode = #tpu.pipeline_mode<synchronous>, transform_indices = @transform_3, window_bounds = array<i64: 64, 128>}, {pipeline_mode = #tpu.pipeline_mode<synchronous>, transform_indices = @transform_4, window_bounds = array<i64: 64, 128>}, {transform_indices = @transform_5, window_bounds = array<i64: 1, 1, 1>}]} {
    %0 = tpu.iota {dimensions = array<i32: 1>} : vector<384x64xi32>
    %c0 = arith.constant 0 : index
    %c0_0 = arith.constant 0 : index
    %1 = vector.load %arg1[%c0, %c0_0] : memref<384x1xi32, #tpu.memory_space<vmem>>, vector<384x1xi32>
    %2 = vector.broadcast %1 : vector<384x1xi32> to vector<384x64xi32>
    %3 = arith.cmpi eq, %2, %0 : vector<384x64xi32>
    %4 = arith.extui %3 : vector<384x64xi1> to vector<384x64xi32>
    %5 = arith.sitofp %4 : vector<384x64xi32> to vector<384x64xf32>
    %c0_1 = arith.constant 0 : index
    %c0_2 = arith.constant 0 : index
    %6 = vector.load %arg2[%c0_1, %c0_2] : memref<384x1xi32, #tpu.memory_space<vmem>>, vector<384x1xi32>
    %7 = vector.broadcast %6 : vector<384x1xi32> to vector<384x64xi32>
    %8 = arith.cmpi eq, %7, %0 : vector<384x64xi32>
    %9 = arith.extui %8 : vector<384x64xi1> to vector<384x64xi32>
    %10 = arith.sitofp %9 : vector<384x64xi32> to vector<384x64xf32>
    %c0_3 = arith.constant 0 : index
    %c0_4 = arith.constant 0 : index
    %11 = vector.load %arg4[%c0_3, %c0_4] : memref<64x128xf32, #tpu.memory_space<vmem>>, vector<64x128xf32>
    %cst = arith.constant dense<0.000000e+00> : vector<384x128xf32>
    %12 = tpu.matmul %5, %11, %cst {dimension_numbers = #tpu.dot_dimension_numbers<[1], [0], [0], [1], [0, 0, 1, 1], [], []>} : vector<384x64xf32>, vector<64x128xf32>, vector<384x128xf32> -> vector<384x128xf32>
    %c0_5 = arith.constant 0 : index
    %c0_6 = arith.constant 0 : index
    %13 = vector.load %arg5[%c0_5, %c0_6] : memref<64x128xf32, #tpu.memory_space<vmem>>, vector<64x128xf32>
    %cst_7 = arith.constant dense<0.000000e+00> : vector<384x128xf32>
    %14 = tpu.matmul %10, %13, %cst_7 {dimension_numbers = #tpu.dot_dimension_numbers<[1], [0], [0], [1], [0, 0, 1, 1], [], []>} : vector<384x64xf32>, vector<64x128xf32>, vector<384x128xf32> -> vector<384x128xf32>
    %15 = arith.mulf %12, %14 : vector<384x128xf32>
    %16 = vector.shape_cast %15 : vector<384x128xf32> to vector<3x128x128xf32>
    %cst_8 = arith.constant dense<0.000000e+00> : vector<3x128xf32>
    %17 = vector.multi_reduction <add>, %16, %cst_8 [2] : vector<3x128x128xf32> to vector<3x128xf32>
    %c0_9 = arith.constant 0 : index
    %c0_10 = arith.constant 0 : index
    %18 = vector.load %arg3[%c0_9, %c0_10] : memref<3x128xf32, #tpu.memory_space<vmem>>, vector<3x128xf32>
    %cst_11 = arith.constant 0.000000e+00 : f32
    %19 = vector.broadcast %cst_11 : f32 to vector<3x128xf32>
    %20 = arith.maximumf %17, %19 : vector<3x128xf32>
    %21 = arith.mulf %17, %18 : vector<3x128xf32>
    %22 = arith.subf %20, %21 : vector<3x128xf32>
    %23 = math.absf %17 : vector<3x128xf32>
    %cst_12 = arith.constant 0.000000e+00 : f32
    %24 = vector.broadcast %cst_12 : f32 to vector<3x128xf32>
    %25 = arith.subf %24, %23 : vector<3x128xf32>
    %26 = math.exp %25 : vector<3x128xf32>
    %27 = math.log1p %26 : vector<3x128xf32>
    %28 = arith.addf %22, %27 : vector<3x128xf32>
    %29 = tpu.iota {dimensions = array<i32: 0>} : vector<3x128xi32>
    %30 = tpu.iota {dimensions = array<i32: 1>} : vector<3x128xi32>
    %c384_i32 = arith.constant 384 : i32
    %31 = arith.muli %arg0, %c384_i32 : i32
    %c128_i32 = arith.constant 128 : i32
    %32 = vector.broadcast %c128_i32 : i32 to vector<3x128xi32>
    %33 = arith.muli %29, %32 : vector<3x128xi32>
    %34 = vector.broadcast %31 : i32 to vector<3x128xi32>
    %35 = arith.addi %34, %33 : vector<3x128xi32>
    %36 = arith.addi %35, %30 : vector<3x128xi32>
    %c300_i32 = arith.constant 300 : i32
    %37 = vector.broadcast %c300_i32 : i32 to vector<3x128xi32>
    %38 = arith.cmpi slt, %36, %37 : vector<3x128xi32>
    %cst_13 = arith.constant 0.000000e+00 : f32
    %39 = vector.broadcast %cst_13 : f32 to vector<3x128xf32>
    %40 = arith.select %38, %28, %39 : vector<3x128xi1>, vector<3x128xf32>
    %41 = vector.shape_cast %40 : vector<3x128xf32> to vector<1x3x128xf32>
    %cst_14 = arith.constant dense<0.000000e+00> : vector<1xf32>
    %42 = vector.multi_reduction <add>, %41, %cst_14 [1, 2] : vector<1x3x128xf32> to vector<1xf32>
    %43 = vector.shape_cast %42 : vector<1xf32> to vector<1x1x1xf32>
    %44 = vector.extract %43[0, 0, 0] : f32 from vector<1x1x1xf32>
    %45 = vector.broadcast %44 : f32 to vector<1x1x1xf32>
    %c0_15 = arith.constant 0 : index
    %c0_16 = arith.constant 0 : index
    %c0_17 = arith.constant 0 : index
    %46 = vector.load %arg6[%c0_15, %c0_16, %c0_17] : memref<1x1x1xf32, #tpu.memory_space<vmem>>, vector<1x1x1xf32>
    tpu.vector_store %arg6[%c0_15, %c0_16, %c0_17], %45 {strides = array<i32>} : memref<1x1x1xf32, #tpu.memory_space<vmem>>, vector<1x1x1xf32>,
    return
  }
  func.func @transform_0(%arg0: i32) -> (i32, i32) {
    %c0_i32 = arith.constant 0 : i32
    %c0_i32_0 = arith.constant 0 : i32
    return %arg0, %c0_i32 : i32, i32
  }
  func.func @transform_1(%arg0: i32) -> (i32, i32) {
    %c0_i32 = arith.constant 0 : i32
    %c0_i32_0 = arith.constant 0 : i32
    return %arg0, %c0_i32 : i32, i32
  }
  func.func @transform_2(%arg0: i32) -> (i32, i32) {
    %c0_i32 = arith.constant 0 : i32
    %c0_i32_0 = arith.constant 0 : i32
    return %arg0, %c0_i32 : i32, i32
  }
  func.func @transform_3(%arg0: i32) -> (i32, i32) {
    %c0_i32 = arith.constant 0 : i32
    %c0_i32_0 = arith.constant 0 : i32
    %c0_i32_1 = arith.constant 0 : i32
    return %c0_i32, %c0_i32_0 : i32, i32
  }
  func.func @transform_4(%arg0: i32) -> (i32, i32) {
    %c0_i32 = arith.constant 0 : i32
    %c0_i32_0 = arith.constant 0 : i32
    %c0_i32_1 = arith.constant 0 : i32
    return %c0_i32, %c0_i32_0 : i32, i32
  }
  func.func @transform_5(%arg0: i32) -> (i32, i32, i32) {
    %c0_i32 = arith.constant 0 : i32
    %c0_i32_0 = arith.constant 0 : i32
    %c0_i32_1 = arith.constant 0 : i32
    return %arg0, %c0_i32, %c0_i32_0 : i32, i32, i32
  }
}

</mosaic_0001>

<llo_original>
// kernel: tpu_custom_call.1
$region0: #{tpu_custom_call.1}
  #allocation0 [shape = 'u32[]', space=smem, size = 0x4, offset = 0x4, fixed_abs, tag = 'smem constant byte address 0x4 - core index']
  #allocation1 [shape = 'u32[144,128]{1,0:T(1,128)}', space=vmem, size = 0x12000, scoped, tag = 'internal scratch']
  %s0 = inlined_call_operand.vmem [shape: s32[384,1], index: 0, kind: input, shape index: {}]
  %s1 = inlined_call_operand.vmem [shape: s32[384,1], index: 1, kind: input, shape index: {}]
  %s2 = inlined_call_operand.vmem [shape: f32[3,128], index: 2, kind: input, shape index: {}]
  %s3 = inlined_call_operand.vmem [shape: f32[64,128], index: 3, kind: input, shape index: {}]
  %s4 = inlined_call_operand.vmem [shape: f32[64,128], index: 4, kind: input, shape index: {}]
  %s5 = inlined_call_operand.hbm [shape: f32[1,1,1], index: 5, kind: output, shape index: {}]
  %s6 = sld [smem:[#allocation0]]
  $region30: #{tpu_custom_call.1} parent=0
    _
  %s8 = ssub.s32 1, %s6
  %s9 = scalar_select 0, %s8, %s6
  $region1: #{tpu_custom_call.1} parent=0
    #allocation2 [shape = 'u8[512]{0}', space=vmem, size = 0x400, scoped, tag = 'output window, operand 0, single buffered']
    #allocation3 [shape = 's32[1]{0}', space=sflag, size = 0x4, scoped, tag = 'scoped memory for tpu_custom_call.1']
    %10 = vsyncpa [#allocation3], 0
    // Predicated region
    $region2: #{tpu_custom_call.1} parent=1 // pred_check
      _
    $region3: #{tpu_custom_call.1} parent=1 // pred_check_branch
      %12 = sbr.rel (0) target = $region5
    $region4: #{tpu_custom_call.1} parent=1 // pred_region
      _
    $region5: #{tpu_custom_call.1} parent=1 // pred_fallthru
      _
    // Predicated region
    $region6: #{tpu_custom_call.1} parent=1 // pred_check
      _
    $region7: #{tpu_custom_call.1} parent=1 // pred_check_branch
      %14 = sbr.rel (0) target = $region9
    $region8: #{tpu_custom_call.1} parent=1 // pred_region
      _
    $region9: #{tpu_custom_call.1} parent=1 // pred_fallthru
      _
    // Predicated region
    $region10: #{tpu_custom_call.1} parent=1 // pred_check
      _
    $region11: #{tpu_custom_call.1} parent=1 // pred_check_branch
      %16 = sbr.rel (0) target = $region13
    $region12: #{tpu_custom_call.1} parent=1 // pred_region
      _
    $region13: #{tpu_custom_call.1} parent=1 // pred_fallthru
      _
    // Predicated region
    $region14: #{tpu_custom_call.1} parent=1 // pred_check
      _
    $region15: #{tpu_custom_call.1} parent=1 // pred_check_branch
      %18 = sbr.rel (0) target = $region17
    $region16: #{tpu_custom_call.1} parent=1 // pred_region
      _
    $region17: #{tpu_custom_call.1} parent=1 // pred_fallthru
      _
    // Predicated region
    $region18: #{tpu_custom_call.1} parent=1 // pred_check
      _
    $region19: #{tpu_custom_call.1} parent=1 // pred_check_branch
      %20 = sbr.rel (0) target = $region21
    $region20: #{tpu_custom_call.1} parent=1 // pred_region
      _
    $region21: #{tpu_custom_call.1} parent=1 // pred_fallthru
      _
    %v21 = vlaneseq
    %v22 = vand.u32 %v21, 127
    %v23 = vld [vmem:[%s0] sm:$0xff]
    %v24 = vld [vmem:[%s0 + $0x8] sm:$0xff]
    %v25 = vld [vmem:[%s0 + $0x10] sm:$0xff]
    %v26 = vld [vmem:[%s0 + $0x18] sm:$0xff]
    %v27 = vld [vmem:[%s0 + $0x20] sm:$0xff]
    %v28 = vld [vmem:[%s0 + $0x28] sm:$0xff]
    %v29 = vld [vmem:[%s0 + $0x30] sm:$0xff]
    %v30 = vld [vmem:[%s0 + $0x38] sm:$0xff]
    %v31 = vld [vmem:[%s0 + $0x40] sm:$0xff]
    %v32 = vld [vmem:[%s0 + $0x48] sm:$0xff]
    %v33 = vld [vmem:[%s0 + $0x50] sm:$0xff]
    %v34 = vld [vmem:[%s0 + $0x58] sm:$0xff]
    %v35 = vld [vmem:[%s0 + $0x60] sm:$0xff]
    %v36 = vld [vmem:[%s0 + $0x68] sm:$0xff]
    %v37 = vld [vmem:[%s0 + $0x70] sm:$0xff]
    %v38 = vld [vmem:[%s0 + $0x78] sm:$0xff]
    %v39 = vld [vmem:[%s0 + $0x80] sm:$0xff]
    %v40 = vld [vmem:[%s0 + $0x88] sm:$0xff]
    %v41 = vld [vmem:[%s0 + $0x90] sm:$0xff]
    %v42 = vld [vmem:[%s0 + $0x98] sm:$0xff]
    %v43 = vld [vmem:[%s0 + $0xa0] sm:$0xff]
    %v44 = vld [vmem:[%s0 + $0xa8] sm:$0xff]
    %v45 = vld [vmem:[%s0 + $0xb0] sm:$0xff]
    %v46 = vld [vmem:[%s0 + $0xb8] sm:$0xff]
    %v47 = vld [vmem:[%s0 + $0xc0] sm:$0xff]
    %v48 = vld [vmem:[%s0 + $0xc8] sm:$0xff]
    %v49 = vld [vmem:[%s0 + $0xd0] sm:$0xff]
    %v50 = vld [vmem:[%s0 + $0xd8] sm:$0xff]
    %v51 = vld [vmem:[%s0 + $0xe0] sm:$0xff]
    %v52 = vld [vmem:[%s0 + $0xe8] sm:$0xff]
    %v53 = vld [vmem:[%s0 + $0xf0] sm:$0xff]
    %v54 = vld [vmem:[%s0 + $0xf8] sm:$0xff]
    %v55 = vld [vmem:[%s0 + $0x100] sm:$0xff]
    %v56 = vld [vmem:[%s0 + $0x108] sm:$0xff]
    %v57 = vld [vmem:[%s0 + $0x110] sm:$0xff]
    %v58 = vld [vmem:[%s0 + $0x118] sm:$0xff]
    %v59 = vld [vmem:[%s0 + $0x120] sm:$0xff]
    %v60 = vld [vmem:[%s0 + $0x128] sm:$0xff]
    %v61 = vld [vmem:[%s0 + $0x130] sm:$0xff]
    %v62 = vld [vmem:[%s0 + $0x138] sm:$0xff]
    %v63 = vld [vmem:[%s0 + $0x140] sm:$0xff]
    %v64 = vld [vmem:[%s0 + $0x148] sm:$0xff]
    %v65 = vld [vmem:[%s0 + $0x150] sm:$0xff]
    %v66 = vld [vmem:[%s0 + $0x158] sm:$0xff]
    %v67 = vld [vmem:[%s0 + $0x160] sm:$0xff]
    %v68 = vld [vmem:[%s0 + $0x168] sm:$0xff]
    %v69 = vld [vmem:[%s0 + $0x170] sm:$0xff]
    %v70 = vld [vmem:[%s0 + $0x178] sm:$0xff]
    %71 = vset.pattern.permute.xlu0 0
    %72 = vperm.xlu0 %71, %v23
    %v73 = vpop.permute.xlu0 %72
    %74 = vset.pattern.permute.xlu0 0
    %75 = vperm.xlu0 %74, %v24
    %v76 = vpop.permute.xlu0 %75
    %77 = vset.pattern.permute.xlu0 0
    %78 = vperm.xlu0 %77, %v25
    %v79 = vpop.permute.xlu0 %78
    %80 = vset.pattern.permute.xlu0 0
    %81 = vperm.xlu0 %80, %v26
    %v82 = vpop.permute.xlu0 %81
    %83 = vset.pattern.permute.xlu0 0
    %84 = vperm.xlu0 %83, %v27
    %v85 = vpop.permute.xlu0 %84
    %86 = vset.pattern.permute.xlu0 0
    %87 = vperm.xlu0 %86, %v28
    %v88 = vpop.permute.xlu0 %87
    %89 = vset.pattern.permute.xlu0 0
    %90 = vperm.xlu0 %89, %v29
    %v91 = vpop.permute.xlu0 %90
    %92 = vset.pattern.permute.xlu0 0
    %93 = vperm.xlu0 %92, %v30
    %v94 = vpop.permute.xlu0 %93
    %95 = vset.pattern.permute.xlu0 0
    %96 = vperm.xlu0 %95, %v31
    %v97 = vpop.permute.xlu0 %96
    %98 = vset.pattern.permute.xlu0 0
    %99 = vperm.xlu0 %98, %v32
    %v100 = vpop.permute.xlu0 %99
    %101 = vset.pattern.permute.xlu0 0
    %102 = vperm.xlu0 %101, %v33
    %v103 = vpop.permute.xlu0 %102
    %104 = vset.pattern.permute.xlu0 0
    %105 = vperm.xlu0 %104, %v34
    %v106 = vpop.permute.xlu0 %105
    %107 = vset.pattern.permute.xlu0 0
    %108 = vperm.xlu0 %107, %v35
    %v109 = vpop.permute.xlu0 %108
    %110 = vset.pattern.permute.xlu0 0
    %111 = vperm.xlu0 %110, %v36
    %v112 = vpop.permute.xlu0 %111
    %113 = vset.pattern.permute.xlu0 0
    %114 = vperm.xlu0 %113, %v37
    %v115 = vpop.permute.xlu0 %114
    %116 = vset.pattern.permute.xlu0 0
    %117 = vperm.xlu0 %116, %v38
    %v118 = vpop.permute.xlu0 %117
    %119 = vset.pattern.permute.xlu0 0
    %120 = vperm.xlu0 %119, %v39
    %v121 = vpop.permute.xlu0 %120
    %122 = vset.pattern.permute.xlu0 0
    %123 = vperm.xlu0 %122, %v40
    %v124 = vpop.permute.xlu0 %123
    %125 = vset.pattern.permute.xlu0 0
    %126 = vperm.xlu0 %125, %v41
    %v127 = vpop.permute.xlu0 %126
    %128 = vset.pattern.permute.xlu0 0
    %129 = vperm.xlu0 %128, %v42
    %v130 = vpop.permute.xlu0 %129
    %131 = vset.pattern.permute.xlu0 0
    %132 = vperm.xlu0 %131, %v43
    %v133 = vpop.permute.xlu0 %132
    %134 = vset.pattern.permute.xlu0 0
    %135 = vperm.xlu0 %134, %v44
    %v136 = vpop.permute.xlu0 %135
    %137 = vset.pattern.permute.xlu0 0
    %138 = vperm.xlu0 %137, %v45
    %v139 = vpop.permute.xlu0 %138
    %140 = vset.pattern.permute.xlu0 0
    %141 = vperm.xlu0 %140, %v46
    %v142 = vpop.permute.xlu0 %141
    %143 = vset.pattern.permute.xlu0 0
    %144 = vperm.xlu0 %143, %v47
    %v145 = vpop.permute.xlu0 %144
    %146 = vset.pattern.permute.xlu0 0
    %147 = vperm.xlu0 %146, %v48
    %v148 = vpop.permute.xlu0 %147
    %149 = vset.pattern.permute.xlu0 0
    %150 = vperm.xlu0 %149, %v49
    %v151 = vpop.permute.xlu0 %150
    %152 = vset.pattern.permute.xlu0 0
    %153 = vperm.xlu0 %152, %v50
    %v154 = vpop.permute.xlu0 %153
    %155 = vset.pattern.permute.xlu0 0
    %156 = vperm.xlu0 %155, %v51
    %v157 = vpop.permute.xlu0 %156
    %158 = vset.pattern.permute.xlu0 0
    %159 = vperm.xlu0 %158, %v52
    %v160 = vpop.permute.xlu0 %159
    %161 = vset.pattern.permute.xlu0 0
    %162 = vperm.xlu0 %161, %v53
    %v163 = vpop.permute.xlu0 %162
    %164 = vset.pattern.permute.xlu0 0
    %165 = vperm.xlu0 %164, %v54
    %v166 = vpop.permute.xlu0 %165
    %167 = vset.pattern.permute.xlu0 0
    %168 = vperm.xlu0 %167, %v55
    %v169 = vpop.permute.xlu0 %168
    %170 = vset.pattern.permute.xlu0 0
    %171 = vperm.xlu0 %170, %v56
    %v172 = vpop.permute.xlu0 %171
    %173 = vset.pattern.permute.xlu0 0
    %174 = vperm.xlu0 %173, %v57
    %v175 = vpop.permute.xlu0 %174
    %176 = vset.pattern.permute.xlu0 0
    %177 = vperm.xlu0 %176, %v58
    %v178 = vpop.permute.xlu0 %177
    %179 = vset.pattern.permute.xlu0 0
    %180 = vperm.xlu0 %179, %v59
    %v181 = vpop.permute.xlu0 %180
    %182 = vset.pattern.permute.xlu0 0
    %183 = vperm.xlu0 %182, %v60
    %v184 = vpop.permute.xlu0 %183
    %185 = vset.pattern.permute.xlu0 0
    %186 = vperm.xlu0 %185, %v61
    %v187 = vpop.permute.xlu0 %186
    %188 = vset.pattern.permute.xlu0 0
    %189 = vperm.xlu0 %188, %v62
    %v190 = vpop.permute.xlu0 %189
    %191 = vset.pattern.permute.xlu0 0
    %192 = vperm.xlu0 %191, %v63
    %v193 = vpop.permute.xlu0 %192
    %194 = vset.pattern.permute.xlu0 0
    %195 = vperm.xlu0 %194, %v64
    %v196 = vpop.permute.xlu0 %195
    %197 = vset.pattern.permute.xlu0 0
    %198 = vperm.xlu0 %197, %v65
    %v199 = vpop.permute.xlu0 %198
    %200 = vset.pattern.permute.xlu0 0
    %201 = vperm.xlu0 %200, %v66
    %v202 = vpop.permute.xlu0 %201
    %203 = vset.pattern.permute.xlu0 0
    %204 = vperm.xlu0 %203, %v67
    %v205 = vpop.permute.xlu0 %204
    %206 = vset.pattern.permute.xlu0 0
    %207 = vperm.xlu0 %206, %v68
    %v208 = vpop.permute.xlu0 %207
    %209 = vset.pattern.permute.xlu0 0
    %210 = vperm.xlu0 %209, %v69
    %v211 = vpop.permute.xlu0 %210
    %212 = vset.pattern.permute.xlu0 0
    %213 = vperm.xlu0 %212, %v70
    %v214 = vpop.permute.xlu0 %213
    %vm215 = vcmp.eq.s32.totalorder %v73, %v22
    %vm216 = vcmp.eq.s32.totalorder %v76, %v22
    %vm217 = vcmp.eq.s32.totalorder %v79, %v22
    %vm218 = vcmp.eq.s32.totalorder %v82, %v22
    %vm219 = vcmp.eq.s32.totalorder %v85, %v22
    %vm220 = vcmp.eq.s32.totalorder %v88, %v22
    %vm221 = vcmp.eq.s32.totalorder %v91, %v22
    %vm222 = vcmp.eq.s32.totalorder %v94, %v22
    %vm223 = vcmp.eq.s32.totalorder %v97, %v22
    %vm224 = vcmp.eq.s32.totalorder %v100, %v22
    %vm225 = vcmp.eq.s32.totalorder %v103, %v22
    %vm226 = vcmp.eq.s32.totalorder %v106, %v22
    %vm227 = vcmp.eq.s32.totalorder %v109, %v22
    %vm228 = vcmp.eq.s32.totalorder %v112, %v22
    %vm229 = vcmp.eq.s32.totalorder %v115, %v22
    %vm230 = vcmp.eq.s32.totalorder %v118, %v22
    %vm231 = vcmp.eq.s32.totalorder %v121, %v22
    %vm232 = vcmp.eq.s32.totalorder %v124, %v22
    %vm233 = vcmp.eq.s32.totalorder %v127, %v22
    %vm234 = vcmp.eq.s32.totalorder %v130, %v22
    %vm235 = vcmp.eq.s32.totalorder %v133, %v22
    %vm236 = vcmp.eq.s32.totalorder %v136, %v22
    %vm237 = vcmp.eq.s32.totalorder %v139, %v22
    %vm238 = vcmp.eq.s32.totalorder %v142, %v22
    %vm239 = vcmp.eq.s32.totalorder %v145, %v22
    %vm240 = vcmp.eq.s32.totalorder %v148, %v22
    %vm241 = vcmp.eq.s32.totalorder %v151, %v22
    %vm242 = vcmp.eq.s32.totalorder %v154, %v22
    %vm243 = vcmp.eq.s32.totalorder %v157, %v22
    %vm244 = vcmp.eq.s32.totalorder %v160, %v22
    %vm245 = vcmp.eq.s32.totalorder %v163, %v22
    %vm246 = vcmp.eq.s32.totalorder %v166, %v22
    %vm247 = vcmp.eq.s32.totalorder %v169, %v22
    %vm248 = vcmp.eq.s32.totalorder %v172, %v22
    %vm249 = vcmp.eq.s32.totalorder %v175, %v22
    %vm250 = vcmp.eq.s32.totalorder %v178, %v22
    %vm251 = vcmp.eq.s32.totalorder %v181, %v22
    %vm252 = vcmp.eq.s32.totalorder %v184, %v22
    %vm253 = vcmp.eq.s32.totalorder %v187, %v22
    %vm254 = vcmp.eq.s32.totalorder %v190, %v22
    %vm255 = vcmp.eq.s32.totalorder %v193, %v22
    %vm256 = vcmp.eq.s32.totalorder %v196, %v22
    %vm257 = vcmp.eq.s32.totalorder %v199, %v22
    %vm258 = vcmp.eq.s32.totalorder %v202, %v22
    %vm259 = vcmp.eq.s32.totalorder %v205, %v22
    %vm260 = vcmp.eq.s32.totalorder %v208, %v22
    %vm261 = vcmp.eq.s32.totalorder %v211, %v22
    %vm262 = vcmp.eq.s32.totalorder %v214, %v22
    %v263 = vsel %vm215, 1, 0
    %v264 = vsel %vm216, 1, 0
    %v265 = vsel %vm217, 1, 0
    %v266 = vsel %vm218, 1, 0
    %v267 = vsel %vm219, 1, 0
    %v268 = vsel %vm220, 1, 0
    %v269 = vsel %vm221, 1, 0
    %v270 = vsel %vm222, 1, 0
    %v271 = vsel %vm223, 1, 0
    %v272 = vsel %vm224, 1, 0
    %v273 = vsel %vm225, 1, 0
    %v274 = vsel %vm226, 1, 0
    %v275 = vsel %vm227, 1, 0
    %v276 = vsel %vm228, 1, 0
    %v277 = vsel %vm229, 1, 0
    %v278 = vsel %vm230, 1, 0
    %v279 = vsel %vm231, 1, 0
    %v280 = vsel %vm232, 1, 0
    %v281 = vsel %vm233, 1, 0
    %v282 = vsel %vm234, 1, 0
    %v283 = vsel %vm235, 1, 0
    %v284 = vsel %vm236, 1, 0
    %v285 = vsel %vm237, 1, 0
    %v286 = vsel %vm238, 1, 0
    %v287 = vsel %vm239, 1, 0
    %v288 = vsel %vm240, 1, 0
    %v289 = vsel %vm241, 1, 0
    %v290 = vsel %vm242, 1, 0
    %v291 = vsel %vm243, 1, 0
    %v292 = vsel %vm244, 1, 0
    %v293 = vsel %vm245, 1, 0
    %v294 = vsel %vm246, 1, 0
    %v295 = vsel %vm247, 1, 0
    %v296 = vsel %vm248, 1, 0
    %v297 = vsel %vm249, 1, 0
    %v298 = vsel %vm250, 1, 0
    %v299 = vsel %vm251, 1, 0
    %v300 = vsel %vm252, 1, 0
    %v301 = vsel %vm253, 1, 0
    %v302 = vsel %vm254, 1, 0
    %v303 = vsel %vm255, 1, 0
    %v304 = vsel %vm256, 1, 0
    %v305 = vsel %vm257, 1, 0
    %v306 = vsel %vm258, 1, 0
    %v307 = vsel %vm259, 1, 0
    %v308 = vsel %vm260, 1, 0
    %v309 = vsel %vm261, 1, 0
    %v310 = vsel %vm262, 1, 0
    %v311 = vcvt.s32.f32 %v263
    %v312 = vcvt.s32.f32 %v264
    %v313 = vcvt.s32.f32 %v265
    %v314 = vcvt.s32.f32 %v266
    %v315 = vcvt.s32.f32 %v267
    %v316 = vcvt.s32.f32 %v268
    %v317 = vcvt.s32.f32 %v269
    %v318 = vcvt.s32.f32 %v270
    %v319 = vcvt.s32.f32 %v271
    %v320 = vcvt.s32.f32 %v272
    %v321 = vcvt.s32.f32 %v273
    %v322 = vcvt.s32.f32 %v274
    %v323 = vcvt.s32.f32 %v275
    %v324 = vcvt.s32.f32 %v276
    %v325 = vcvt.s32.f32 %v277
    %v326 = vcvt.s32.f32 %v278
    %v327 = vcvt.s32.f32 %v279
    %v328 = vcvt.s32.f32 %v280
    %v329 = vcvt.s32.f32 %v281
    %v330 = vcvt.s32.f32 %v282
    %v331 = vcvt.s32.f32 %v283
    %v332 = vcvt.s32.f32 %v284
    %v333 = vcvt.s32.f32 %v285
    %v334 = vcvt.s32.f32 %v286
    %v335 = vcvt.s32.f32 %v287
    %v336 = vcvt.s32.f32 %v288
    %v337 = vcvt.s32.f32 %v289
    %v338 = vcvt.s32.f32 %v290
    %v339 = vcvt.s32.f32 %v291
    %v340 = vcvt.s32.f32 %v292
    %v341 = vcvt.s32.f32 %v293
    %v342 = vcvt.s32.f32 %v294
    %v343 = vcvt.s32.f32 %v295
    %v344 = vcvt.s32.f32 %v296
    %v345 = vcvt.s32.f32 %v297
    %v346 = vcvt.s32.f32 %v298
    %v347 = vcvt.s32.f32 %v299
    %v348 = vcvt.s32.f32 %v300
    %v349 = vcvt.s32.f32 %v301
    %v350 = vcvt.s32.f32 %v302
    %v351 = vcvt.s32.f32 %v303
    %v352 = vcvt.s32.f32 %v304
    %v353 = vcvt.s32.f32 %v305
    %v354 = vcvt.s32.f32 %v306
    %v355 = vcvt.s32.f32 %v307
    %v356 = vcvt.s32.f32 %v308
    %v357 = vcvt.s32.f32 %v309
    %v358 = vcvt.s32.f32 %v310
    %v359 = vld [vmem:[%s1] sm:$0xff]
    %v360 = vld [vmem:[%s1 + $0x8] sm:$0xff]
    %v361 = vld [vmem:[%s1 + $0x10] sm:$0xff]
    %v362 = vld [vmem:[%s1 + $0x18] sm:$0xff]
    %v363 = vld [vmem:[%s1 + $0x20] sm:$0xff]
    %v364 = vld [vmem:[%s1 + $0x28] sm:$0xff]
    %v365 = vld [vmem:[%s1 + $0x30] sm:$0xff]
    %v366 = vld [vmem:[%s1 + $0x38] sm:$0xff]
    %v367 = vld [vmem:[%s1 + $0x40] sm:$0xff]
    %v368 = vld [vmem:[%s1 + $0x48] sm:$0xff]
    %v369 = vld [vmem:[%s1 + $0x50] sm:$0xff]
    %v370 = vld [vmem:[%s1 + $0x58] sm:$0xff]
    %v371 = vld [vmem:[%s1 + $0x60] sm:$0xff]
    %v372 = vld [vmem:[%s1 + $0x68] sm:$0xff]
    %v373 = vld [vmem:[%s1 + $0x70] sm:$0xff]
    %v374 = vld [vmem:[%s1 + $0x78] sm:$0xff]
    %v375 = vld [vmem:[%s1 + $0x80] sm:$0xff]
    %v376 = vld [vmem:[%s1 + $0x88] sm:$0xff]
    %v377 = vld [vmem:[%s1 + $0x90] sm:$0xff]
    %v378 = vld [vmem:[%s1 + $0x98] sm:$0xff]
    %v379 = vld [vmem:[%s1 + $0xa0] sm:$0xff]
    %v380 = vld [vmem:[%s1 + $0xa8] sm:$0xff]
    %v381 = vld [vmem:[%s1 + $0xb0] sm:$0xff]
    %v382 = vld [vmem:[%s1 + $0xb8] sm:$0xff]
    %v383 = vld [vmem:[%s1 + $0xc0] sm:$0xff]
    %v384 = vld [vmem:[%s1 + $0xc8] sm:$0xff]
    %v385 = vld [vmem:[%s1 + $0xd0] sm:$0xff]
    %v386 = vld [vmem:[%s1 + $0xd8] sm:$0xff]
    %v387 = vld [vmem:[%s1 + $0xe0] sm:$0xff]
    %v388 = vld [vmem:[%s1 + $0xe8] sm:$0xff]
    %v389 = vld [vmem:[%s1 + $0xf0] sm:$0xff]
    %v390 = vld [vmem:[%s1 + $0xf8] sm:$0xff]
    %v391 = vld [vmem:[%s1 + $0x100] sm:$0xff]
    %v392 = vld [vmem:[%s1 + $0x108] sm:$0xff]
    %v393 = vld [vmem:[%s1 + $0x110] sm:$0xff]
    %v394 = vld [vmem:[%s1 + $0x118] sm:$0xff]
    %v395 = vld [vmem:[%s1 + $0x120] sm:$0xff]
    %v396 = vld [vmem:[%s1 + $0x128] sm:$0xff]
    %v397 = vld [vmem:[%s1 + $0x130] sm:$0xff]
    %v398 = vld [vmem:[%s1 + $0x138] sm:$0xff]
    %v399 = vld [vmem:[%s1 + $0x140] sm:$0xff]
    %v400 = vld [vmem:[%s1 + $0x148] sm:$0xff]
    %v401 = vld [vmem:[%s1 + $0x150] sm:$0xff]
    %v402 = vld [vmem:[%s1 + $0x158] sm:$0xff]
    %v403 = vld [vmem:[%s1 + $0x160] sm:$0xff]
    %v404 = vld [vmem:[%s1 + $0x168] sm:$0xff]
    %v405 = vld [vmem:[%s1 + $0x170] sm:$0xff]
    %v406 = vld [vmem:[%s1 + $0x178] sm:$0xff]
    %407 = vset.pattern.permute.xlu0 0
    %408 = vperm.xlu0 %407, %v359
    %v409 = vpop.permute.xlu0 %408
    %410 = vset.pattern.permute.xlu0 0
    %411 = vperm.xlu0 %410, %v360
    %v412 = vpop.permute.xlu0 %411
    %413 = vset.pattern.permute.xlu0 0
    %414 = vperm.xlu0 %413, %v361
    %v415 = vpop.permute.xlu0 %414
    %416 = vset.pattern.permute.xlu0 0
    %417 = vperm.xlu0 %416, %v362
    %v418 = vpop.permute.xlu0 %417
    %419 = vset.pattern.permute.xlu0 0
    %420 = vperm.xlu0 %419, %v363
    %v421 = vpop.permute.xlu0 %420
    %422 = vset.pattern.permute.xlu0 0
    %423 = vperm.xlu0 %422, %v364
    %v424 = vpop.permute.xlu0 %423
    %425 = vset.pattern.permute.xlu0 0
    %426 = vperm.xlu0 %425, %v365
    %v427 = vpop.permute.xlu0 %426
    %428 = vset.pattern.permute.xlu0 0
    %429 = vperm.xlu0 %428, %v366
    %v430 = vpop.permute.xlu0 %429
    %431 = vset.pattern.permute.xlu0 0
    %432 = vperm.xlu0 %431, %v367
    %v433 = vpop.permute.xlu0 %432
    %434 = vset.pattern.permute.xlu0 0
    %435 = vperm.xlu0 %434, %v368
    %v436 = vpop.permute.xlu0 %435
    %437 = vset.pattern.permute.xlu0 0
    %438 = vperm.xlu0 %437, %v369
    %v439 = vpop.permute.xlu0 %438
    %440 = vset.pattern.permute.xlu0 0
    %441 = vperm.xlu0 %440, %v370
    %v442 = vpop.permute.xlu0 %441
    %443 = vset.pattern.permute.xlu0 0
    %444 = vperm.xlu0 %443, %v371
    %v445 = vpop.permute.xlu0 %444
    %446 = vset.pattern.permute.xlu0 0
    %447 = vperm.xlu0 %446, %v372
    %v448 = vpop.permute.xlu0 %447
    %449 = vset.pattern.permute.xlu0 0
    %450 = vperm.xlu0 %449, %v373
    %v451 = vpop.permute.xlu0 %450
    %452 = vset.pattern.permute.xlu0 0
    %453 = vperm.xlu0 %452, %v374
    %v454 = vpop.permute.xlu0 %453
    %455 = vset.pattern.permute.xlu0 0
    %456 = vperm.xlu0 %455, %v375
    %v457 = vpop.permute.xlu0 %456
    %458 = vset.pattern.permute.xlu0 0
    %459 = vperm.xlu0 %458, %v376
    %v460 = vpop.permute.xlu0 %459
    %461 = vset.pattern.permute.xlu0 0
    %462 = vperm.xlu0 %461, %v377
    %v463 = vpop.permute.xlu0 %462
    %464 = vset.pattern.permute.xlu0 0
    %465 = vperm.xlu0 %464, %v378
    %v466 = vpop.permute.xlu0 %465
    %467 = vset.pattern.permute.xlu0 0
    %468 = vperm.xlu0 %467, %v379
    %v469 = vpop.permute.xlu0 %468
    %470 = vset.pattern.permute.xlu0 0
    %471 = vperm.xlu0 %470, %v380
    %v472 = vpop.permute.xlu0 %471
    %473 = vset.pattern.permute.xlu0 0
    %474 = vperm.xlu0 %473, %v381
    %v475 = vpop.permute.xlu0 %474
    %476 = vset.pattern.permute.xlu0 0
    %477 = vperm.xlu0 %476, %v382
    %v478 = vpop.permute.xlu0 %477
    %479 = vset.pattern.permute.xlu0 0
    %480 = vperm.xlu0 %479, %v383
    %v481 = vpop.permute.xlu0 %480
    %482 = vset.pattern.permute.xlu0 0
    %483 = vperm.xlu0 %482, %v384
    %v484 = vpop.permute.xlu0 %483
    %485 = vset.pattern.permute.xlu0 0
    %486 = vperm.xlu0 %485, %v385
    %v487 = vpop.permute.xlu0 %486
    %488 = vset.pattern.permute.xlu0 0
    %489 = vperm.xlu0 %488, %v386
    %v490 = vpop.permute.xlu0 %489
    %491 = vset.pattern.permute.xlu0 0
    %492 = vperm.xlu0 %491, %v387
    %v493 = vpop.permute.xlu0 %492
    %494 = vset.pattern.permute.xlu0 0
    %495 = vperm.xlu0 %494, %v388
    %v496 = vpop.permute.xlu0 %495
    %497 = vset.pattern.permute.xlu0 0
    %498 = vperm.xlu0 %497, %v389
    %v499 = vpop.permute.xlu0 %498
    %500 = vset.pattern.permute.xlu0 0
    %501 = vperm.xlu0 %500, %v390
    %v502 = vpop.permute.xlu0 %501
    %503 = vset.pattern.permute.xlu0 0
    %504 = vperm.xlu0 %503, %v391
    %v505 = vpop.permute.xlu0 %504
    %506 = vset.pattern.permute.xlu0 0
    %507 = vperm.xlu0 %506, %v392
    %v508 = vpop.permute.xlu0 %507
    %509 = vset.pattern.permute.xlu0 0
    %510 = vperm.xlu0 %509, %v393
    %v511 = vpop.permute.xlu0 %510
    %512 = vset.pattern.permute.xlu0 0
    %513 = vperm.xlu0 %512, %v394
    %v514 = vpop.permute.xlu0 %513
    %515 = vset.pattern.permute.xlu0 0
    %516 = vperm.xlu0 %515, %v395
    %v517 = vpop.permute.xlu0 %516
    %518 = vset.pattern.permute.xlu0 0
    %519 = vperm.xlu0 %518, %v396
    %v520 = vpop.permute.xlu0 %519
    %521 = vset.pattern.permute.xlu0 0
    %522 = vperm.xlu0 %521, %v397
    %v523 = vpop.permute.xlu0 %522
    %524 = vset.pattern.permute.xlu0 0
    %525 = vperm.xlu0 %524, %v398
    %v526 = vpop.permute.xlu0 %525
    %527 = vset.pattern.permute.xlu0 0
    %528 = vperm.xlu0 %527, %v399
    %v529 = vpop.permute.xlu0 %528
    %530 = vset.pattern.permute.xlu0 0
    %531 = vperm.xlu0 %530, %v400
    %v532 = vpop.permute.xlu0 %531
    %533 = vset.pattern.permute.xlu0 0
    %534 = vperm.xlu0 %533, %v401
    %v535 = vpop.permute.xlu0 %534
    %536 = vset.pattern.permute.xlu0 0
    %537 = vperm.xlu0 %536, %v402
    %v538 = vpop.permute.xlu0 %537
    %539 = vset.pattern.permute.xlu0 0
    %540 = vperm.xlu0 %539, %v403
    %v541 = vpop.permute.xlu0 %540
    %542 = vset.pattern.permute.xlu0 0
    %543 = vperm.xlu0 %542, %v404
    %v544 = vpop.permute.xlu0 %543
    %545 = vset.pattern.permute.xlu0 0
    %546 = vperm.xlu0 %545, %v405
    %v547 = vpop.permute.xlu0 %546
    %548 = vset.pattern.permute.xlu0 0
    %549 = vperm.xlu0 %548, %v406
    %v550 = vpop.permute.xlu0 %549
    %vm551 = vcmp.eq.s32.totalorder %v409, %v22
    %vm552 = vcmp.eq.s32.totalorder %v412, %v22
    %vm553 = vcmp.eq.s32.totalorder %v415, %v22
    %vm554 = vcmp.eq.s32.totalorder %v418, %v22
    %vm555 = vcmp.eq.s32.totalorder %v421, %v22
    %vm556 = vcmp.eq.s32.totalorder %v424, %v22
    %vm557 = vcmp.eq.s32.totalorder %v427, %v22
    %vm558 = vcmp.eq.s32.totalorder %v430, %v22
    %vm559 = vcmp.eq.s32.totalorder %v433, %v22
    %vm560 = vcmp.eq.s32.totalorder %v436, %v22
    %vm561 = vcmp.eq.s32.totalorder %v439, %v22
    %vm562 = vcmp.eq.s32.totalorder %v442, %v22
    %vm563 = vcmp.eq.s32.totalorder %v445, %v22
    %vm564 = vcmp.eq.s32.totalorder %v448, %v22
    %vm565 = vcmp.eq.s32.totalorder %v451, %v22
    %vm566 = vcmp.eq.s32.totalorder %v454, %v22
    %vm567 = vcmp.eq.s32.totalorder %v457, %v22
    %vm568 = vcmp.eq.s32.totalorder %v460, %v22
    %vm569 = vcmp.eq.s32.totalorder %v463, %v22
    %vm570 = vcmp.eq.s32.totalorder %v466, %v22
    %vm571 = vcmp.eq.s32.totalorder %v469, %v22
    %vm572 = vcmp.eq.s32.totalorder %v472, %v22
    %vm573 = vcmp.eq.s32.totalorder %v475, %v22
    %vm574 = vcmp.eq.s32.totalorder %v478, %v22
    %vm575 = vcmp.eq.s32.totalorder %v481, %v22
    %vm576 = vcmp.eq.s32.totalorder %v484, %v22
    %vm577 = vcmp.eq.s32.totalorder %v487, %v22
    %vm578 = vcmp.eq.s32.totalorder %v490, %v22
    %vm579 = vcmp.eq.s32.totalorder %v493, %v22
    %vm580 = vcmp.eq.s32.totalorder %v496, %v22
    %vm581 = vcmp.eq.s32.totalorder %v499, %v22
    %vm582 = vcmp.eq.s32.totalorder %v502, %v22
    %vm583 = vcmp.eq.s32.totalorder %v505, %v22
    %vm584 = vcmp.eq.s32.totalorder %v508, %v22
    %vm585 = vcmp.eq.s32.totalorder %v511, %v22
    %vm586 = vcmp.eq.s32.totalorder %v514, %v22
    %vm587 = vcmp.eq.s32.totalorder %v517, %v22
    %vm588 = vcmp.eq.s32.totalorder %v520, %v22
    %vm589 = vcmp.eq.s32.totalorder %v523, %v22
    %vm590 = vcmp.eq.s32.totalorder %v526, %v22
    %vm591 = vcmp.eq.s32.totalorder %v529, %v22
    %vm592 = vcmp.eq.s32.totalorder %v532, %v22
    %vm593 = vcmp.eq.s32.totalorder %v535, %v22
    %vm594 = vcmp.eq.s32.totalorder %v538, %v22
    %vm595 = vcmp.eq.s32.totalorder %v541, %v22
    %vm596 = vcmp.eq.s32.totalorder %v544, %v22
    %vm597 = vcmp.eq.s32.totalorder %v547, %v22
    %vm598 = vcmp.eq.s32.totalorder %v550, %v22
    %v599 = vsel %vm551, 1, 0
    %v600 = vsel %vm552, 1, 0
    %v601 = vsel %vm553, 1, 0
    %v602 = vsel %vm554, 1, 0
    %v603 = vsel %vm555, 1, 0
    %v604 = vsel %vm556, 1, 0
    %v605 = vsel %vm557, 1, 0
    %v606 = vsel %vm558, 1, 0
    %v607 = vsel %vm559, 1, 0
    %v608 = vsel %vm560, 1, 0
    %v609 = vsel %vm561, 1, 0
    %v610 = vsel %vm562, 1, 0
    %v611 = vsel %vm563, 1, 0
    %v612 = vsel %vm564, 1, 0
    %v613 = vsel %vm565, 1, 0
    %v614 = vsel %vm566, 1, 0
    %v615 = vsel %vm567, 1, 0
    %v616 = vsel %vm568, 1, 0
    %v617 = vsel %vm569, 1, 0
    %v618 = vsel %vm570, 1, 0
    %v619 = vsel %vm571, 1, 0
    %v620 = vsel %vm572, 1, 0
    %v621 = vsel %vm573, 1, 0
    %v622 = vsel %vm574, 1, 0
    %v623 = vsel %vm575, 1, 0
    %v624 = vsel %vm576, 1, 0
    %v625 = vsel %vm577, 1, 0
    %v626 = vsel %vm578, 1, 0
    %v627 = vsel %vm579, 1, 0
    %v628 = vsel %vm580, 1, 0
    %v629 = vsel %vm581, 1, 0
    %v630 = vsel %vm582, 1, 0
    %v631 = vsel %vm583, 1, 0
    %v632 = vsel %vm584, 1, 0
    %v633 = vsel %vm585, 1, 0
    %v634 = vsel %vm586, 1, 0
    %v635 = vsel %vm587, 1, 0
    %v636 = vsel %vm588, 1, 0
    %v637 = vsel %vm589, 1, 0
    %v638 = vsel %vm590, 1, 0
    %v639 = vsel %vm591, 1, 0
    %v640 = vsel %vm592, 1, 0
    %v641 = vsel %vm593, 1, 0
    %v642 = vsel %vm594, 1, 0
    %v643 = vsel %vm595, 1, 0
    %v644 = vsel %vm596, 1, 0
    %v645 = vsel %vm597, 1, 0
    %v646 = vsel %vm598, 1, 0
    %v647 = vcvt.s32.f32 %v599
    %v648 = vcvt.s32.f32 %v600
    %v649 = vcvt.s32.f32 %v601
    %v650 = vcvt.s32.f32 %v602
    %v651 = vcvt.s32.f32 %v603
    %v652 = vcvt.s32.f32 %v604
    %v653 = vcvt.s32.f32 %v605
    %v654 = vcvt.s32.f32 %v606
    %v655 = vcvt.s32.f32 %v607
    %v656 = vcvt.s32.f32 %v608
    %v657 = vcvt.s32.f32 %v609
    %v658 = vcvt.s32.f32 %v610
    %v659 = vcvt.s32.f32 %v611
    %v660 = vcvt.s32.f32 %v612
    %v661 = vcvt.s32.f32 %v613
    %v662 = vcvt.s32.f32 %v614
    %v663 = vcvt.s32.f32 %v615
    %v664 = vcvt.s32.f32 %v616
    %v665 = vcvt.s32.f32 %v617
    %v666 = vcvt.s32.f32 %v618
    %v667 = vcvt.s32.f32 %v619
    %v668 = vcvt.s32.f32 %v620
    %v669 = vcvt.s32.f32 %v621
    %v670 = vcvt.s32.f32 %v622
    %v671 = vcvt.s32.f32 %v623
    %v672 = vcvt.s32.f32 %v624
    %v673 = vcvt.s32.f32 %v625
    %v674 = vcvt.s32.f32 %v626
    %v675 = vcvt.s32.f32 %v627
    %v676 = vcvt.s32.f32 %v628
    %v677 = vcvt.s32.f32 %v629
    %v678 = vcvt.s32.f32 %v630
    %v679 = vcvt.s32.f32 %v631
    %v680 = vcvt.s32.f32 %v632
    %v681 = vcvt.s32.f32 %v633
    %v682 = vcvt.s32.f32 %v634
    %v683 = vcvt.s32.f32 %v635
    %v684 = vcvt.s32.f32 %v636
    %v685 = vcvt.s32.f32 %v637
    %v686 = vcvt.s32.f32 %v638
    %v687 = vcvt.s32.f32 %v639
    %v688 = vcvt.s32.f32 %v640
    %v689 = vcvt.s32.f32 %v641
    %v690 = vcvt.s32.f32 %v642
    %v691 = vcvt.s32.f32 %v643
    %v692 = vcvt.s32.f32 %v644
    %v693 = vcvt.s32.f32 %v645
    %v694 = vcvt.s32.f32 %v646
    %v695 = vld [vmem:[%s3] sm:$0xff]
    %v696 = vld [vmem:[%s3 + $0x8] sm:$0xff]
    %v697 = vld [vmem:[%s3 + $0x10] sm:$0xff]
    %v698 = vld [vmem:[%s3 + $0x18] sm:$0xff]
    %v699 = vld [vmem:[%s3 + $0x20] sm:$0xff]
    %v700 = vld [vmem:[%s3 + $0x28] sm:$0xff]
    %v701 = vld [vmem:[%s3 + $0x30] sm:$0xff]
    %v702 = vld [vmem:[%s3 + $0x38] sm:$0xff]
    %vm703 = vcmask 523264
    %v705 = vsel %vm703, %v311, 0
    %v708 = vsel %vm703, %v312, 0
    %v711 = vsel %vm703, %v313, 0
    %v714 = vsel %vm703, %v314, 0
    %v717 = vsel %vm703, %v315, 0
    %v720 = vsel %vm703, %v316, 0
    %v723 = vsel %vm703, %v317, 0
    %v726 = vsel %vm703, %v318, 0
    %v729 = vsel %vm703, %v319, 0
    %v732 = vsel %vm703, %v320, 0
    %v735 = vsel %vm703, %v321, 0
    %v738 = vsel %vm703, %v322, 0
    %v741 = vsel %vm703, %v323, 0
    %v744 = vsel %vm703, %v324, 0
    %v747 = vsel %vm703, %v325, 0
    %v750 = vsel %vm703, %v326, 0
    %v753 = vsel %vm703, %v327, 0
    %v756 = vsel %vm703, %v328, 0
    %v759 = vsel %vm703, %v329, 0
    %v762 = vsel %vm703, %v330, 0
    %v765 = vsel %vm703, %v331, 0
    %v768 = vsel %vm703, %v332, 0
    %v771 = vsel %vm703, %v333, 0
    %v774 = vsel %vm703, %v334, 0
    %v777 = vsel %vm703, %v335, 0
    %v780 = vsel %vm703, %v336, 0
    %v783 = vsel %vm703, %v337, 0
    %v786 = vsel %vm703, %v338, 0
    %v789 = vsel %vm703, %v339, 0
    %v792 = vsel %vm703, %v340, 0
    %v795 = vsel %vm703, %v341, 0
    %v798 = vsel %vm703, %v342, 0
    %v801 = vsel %vm703, %v343, 0
    %v804 = vsel %vm703, %v344, 0
    %v807 = vsel %vm703, %v345, 0
    %v810 = vsel %vm703, %v346, 0
    %v813 = vsel %vm703, %v347, 0
    %v816 = vsel %vm703, %v348, 0
    %v819 = vsel %vm703, %v349, 0
    %v822 = vsel %vm703, %v350, 0
    %v825 = vsel %vm703, %v351, 0
    %v828 = vsel %vm703, %v352, 0
    %v831 = vsel %vm703, %v353, 0
    %v834 = vsel %vm703, %v354, 0
    %v837 = vsel %vm703, %v355, 0
    %v840 = vsel %vm703, %v356, 0
    %v843 = vsel %vm703, %v357, 0
    %v846 = vsel %vm703, %v358, 0
    %848 = vmatprep.subr.mxu0 0.0
    %849 = vmatpush1.msra.mxu0 %v695
    %850 = vmatprep.subr.mxu0 0.0
    %851 = vmatpush1.msra.mxu0 %v696
    %852 = vmatprep.subr.mxu0 0.0
    %853 = vmatpush1.msra.mxu0 %v697
    %854 = vmatprep.subr.mxu0 0.0
    %855 = vmatpush1.msra.mxu0 %v698
    %856 = vmatprep.subr.mxu0 0.0
    %857 = vmatpush1.msra.mxu0 %v699
    %858 = vmatprep.subr.mxu0 0.0
    %859 = vmatpush1.msra.mxu0 %v700
    %860 = vmatprep.subr.mxu0 0.0
    %861 = vmatpush1.msra.mxu0 %v701
    %862 = vmatprep.subr.mxu0 0.0
    %863 = vmatpush1.msra.mxu0 %v702
    %864 = vmatprep.subr.mxu0 0.0
    %865 = vmatpush1.msra.mxu0 0.0
    %866 = vmatprep.subr.mxu0 0.0
    %867 = vmatpush1.msra.mxu0 0.0
    %868 = vmatprep.subr.mxu0 0.0
    %869 = vmatpush1.msra.mxu0 0.0
    %870 = vmatprep.subr.mxu0 0.0
    %871 = vmatpush1.msra.mxu0 0.0
    %872 = vmatprep.subr.mxu0 0.0
    %873 = vmatpush1.msra.mxu0 0.0
    %874 = vmatprep.subr.mxu0 0.0
    %875 = vmatpush1.msra.mxu0 0.0
    %876 = vmatprep.subr.mxu0 0.0
    %877 = vmatpush1.msra.mxu0 0.0
    %878 = vmatprep.subr.mxu0 0.0
    %879 = vmatpush1.msra.mxu0 0.0
    %880 = vmatprep.subr.mxu0 0.0
    %881 = vmatpush1.msra.mxu0 0.0
    %882 = vmatprep.subr.mxu0 0.0
    %883 = vmatpush1.msra.mxu0 0.0
    %884 = vmatprep.subr.mxu0 0.0
    %885 = vmatpush1.msra.mxu0 0.0
    %886 = vmatprep.subr.mxu0 0.0
    %887 = vmatpush1.msra.mxu0 0.0
    %888 = vmatprep.subr.mxu0 0.0
    %889 = vmatpush1.msra.mxu0 0.0
    %890 = vmatprep.subr.mxu0 0.0
    %891 = vmatpush1.msra.mxu0 0.0
    %892 = vmatprep.subr.mxu0 0.0
    %893 = vmatpush1.msra.mxu0 0.0
    %894 = vmatprep.subr.mxu0 0.0
    %895 = vmatpush1.msra.mxu0 0.0
    %896 = vmatprep.subr.mxu0 0.0
    %897 = vmatpush1.msra.mxu0 0.0
    %898 = vmatprep.subr.mxu0 0.0
    %899 = vmatpush1.msra.mxu0 0.0
    %900 = vmatprep.subr.mxu0 0.0
    %901 = vmatpush1.msra.mxu0 0.0
    %902 = vmatprep.subr.mxu0 0.0
    %903 = vmatpush1.msra.mxu0 0.0
    %904 = vmatprep.subr.mxu0 0.0
    %905 = vmatpush1.msra.mxu0 0.0
    %906 = vmatprep.subr.mxu0 0.0
    %907 = vmatpush1.msra.mxu0 0.0
    %908 = vmatprep.subr.mxu0 0.0
    %909 = vmatpush1.msra.mxu0 0.0
    %910 = vmatprep.subr.mxu0 0.0
    %911 = vmatpush1.msra.mxu0 0.0
    %912 = vmatprep.mubr.f32.mxu0 0.0
    %913 = vmatmul.mubr.f32.gmra.mrb[0].mxu0 %v705
    %v914 = vpop.f32.mrb[0].mxu0
    %v915 = vadd.f32 0.0, %v914
    %v916 = vpop.f32.mrb[0].mxu0
    %917 = vmatprep.mubr.f32.mxu0 0.0
    %918 = vmatmul.mubr.f32.gmra.mrb[0].mxu0 %v708
    %v919 = vpop.f32.mrb[0].mxu0
    %v920 = vadd.f32 0.0, %v919
    %v921 = vpop.f32.mrb[0].mxu0
    %922 = vmatprep.mubr.f32.mxu0 0.0
    %923 = vmatmul.mubr.f32.gmra.mrb[0].mxu0 %v711
    %v924 = vpop.f32.mrb[0].mxu0
    %v925 = vadd.f32 0.0, %v924
    %v926 = vpop.f32.mrb[0].mxu0
    %927 = vmatprep.mubr.f32.mxu0 0.0
    %928 = vmatmul.mubr.f32.gmra.mrb[0].mxu0 %v714
    %v929 = vpop.f32.mrb[0].mxu0
    %v930 = vadd.f32 0.0, %v929
    %v931 = vpop.f32.mrb[0].mxu0
    %932 = vmatprep.mubr.f32.mxu0 0.0
    %933 = vmatmul.mubr.f32.gmra.mrb[0].mxu0 %v717
    %v934 = vpop.f32.mrb[0].mxu0
    %v935 = vadd.f32 0.0, %v934
    %v936 = vpop.f32.mrb[0].mxu0
    %937 = vmatprep.mubr.f32.mxu0 0.0
    %938 = vmatmul.mubr.f32.gmra.mrb[0].mxu0 %v720
    %v939 = vpop.f32.mrb[0].mxu0
    %v940 = vadd.f32 0.0, %v939
    %v941 = vpop.f32.mrb[0].mxu0
    %942 = vmatprep.mubr.f32.mxu0 0.0
    %943 = vmatmul.mubr.f32.gmra.mrb[0].mxu0 %v723
    %v944 = vpop.f32.mrb[0].mxu0
    %v945 = vadd.f32 0.0, %v944
    %v946 = vpop.f32.mrb[0].mxu0
    %947 = vmatprep.mubr.f32.mxu0 0.0
    %948 = vmatmul.mubr.f32.gmra.mrb[0].mxu0 %v726
    %v949 = vpop.f32.mrb[0].mxu0
    %v950 = vadd.f32 0.0, %v949
    %v951 = vpop.f32.mrb[0].mxu0
    %952 = vmatprep.mubr.f32.mxu0 0.0
    %953 = vmatmul.mubr.f32.gmra.mrb[0].mxu0 %v729
    %v954 = vpop.f32.mrb[0].mxu0
    %v955 = vadd.f32 0.0, %v954
    %v956 = vpop.f32.mrb[0].mxu0
    %957 = vmatprep.mubr.f32.mxu0 0.0
    %958 = vmatmul.mubr.f32.gmra.mrb[0].mxu0 %v732
    %v959 = vpop.f32.mrb[0].mxu0
    %v960 = vadd.f32 0.0, %v959
    %v961 = vpop.f32.mrb[0].mxu0
    %962 = vmatprep.mubr.f32.mxu0 0.0
    %963 = vmatmul.mubr.f32.gmra.mrb[0].mxu0 %v735
    %v964 = vpop.f32.mrb[0].mxu0
    %v965 = vadd.f32 0.0, %v964
    %v966 = vpop.f32.mrb[0].mxu0
    %967 = vmatprep.mubr.f32.mxu0 0.0
    %968 = vmatmul.mubr.f32.gmra.mrb[0].mxu0 %v738
    %v969 = vpop.f32.mrb[0].mxu0
    %v970 = vadd.f32 0.0, %v969
    %v971 = vpop.f32.mrb[0].mxu0
    %972 = vmatprep.mubr.f32.mxu0 0.0
    %973 = vmatmul.mubr.f32.gmra.mrb[0].mxu0 %v741
    %v974 = vpop.f32.mrb[0].mxu0
    %v975 = vadd.f32 0.0, %v974
    %v976 = vpop.f32.mrb[0].mxu0
    %977 = vmatprep.mubr.f32.mxu0 0.0
    %978 = vmatmul.mubr.f32.gmra.mrb[0].mxu0 %v744
    %v979 = vpop.f32.mrb[0].mxu0
    %v980 = vadd.f32 0.0, %v979
    %v981 = vpop.f32.mrb[0].mxu0
    %982 = vmatprep.mubr.f32.mxu0 0.0
    %983 = vmatmul.mubr.f32.gmra.mrb[0].mxu0 %v747
    %v984 = vpop.f32.mrb[0].mxu0
    %v985 = vadd.f32 0.0, %v984
    %v986 = vpop.f32.mrb[0].mxu0
    %987 = vmatprep.mubr.f32.mxu0 0.0
    %988 = vmatmul.mubr.f32.gmra.mrb[0].mxu0 %v750
    %v989 = vpop.f32.mrb[0].mxu0
    %v990 = vadd.f32 0.0, %v989
    %v991 = vpop.f32.mrb[0].mxu0
    %992 = vmatprep.mubr.f32.mxu0 0.0
    %993 = vmatmul.mubr.f32.gmra.mrb[0].mxu0 %v753
    %v994 = vpop.f32.mrb[0].mxu0
    %v995 = vadd.f32 0.0, %v994
    %v996 = vpop.f32.mrb[0].mxu0
    %997 = vmatprep.mubr.f32.mxu0 0.0
    %998 = vmatmul.mubr.f32.gmra.mrb[0].mxu0 %v756
    %v999 = vpop.f32.mrb[0].mxu0
    %v1000 = vadd.f32 0.0, %v999
    %v1001 = vpop.f32.mrb[0].mxu0
    %1002 = vmatprep.mubr.f32.mxu0 0.0
    %1003 = vmatmul.mubr.f32.gmra.mrb[0].mxu0 %v759
    %v1004 = vpop.f32.mrb[0].mxu0
    %v1005 = vadd.f32 0.0, %v1004
    %v1006 = vpop.f32.mrb[0].mxu0
    %1007 = vmatprep.mubr.f32.mxu0 0.0
    %1008 = vmatmul.mubr.f32.gmra.mrb[0].mxu0 %v762
    %v1009 = vpop.f32.mrb[0].mxu0
    %v1010 = vadd.f32 0.0, %v1009
    %v1011 = vpop.f32.mrb[0].mxu0
    %1012 = vmatprep.mubr.f32.mxu0 0.0
    %1013 = vmatmul.mubr.f32.gmra.mrb[0].mxu0 %v765
    %v1014 = vpop.f32.mrb[0].mxu0
    %v1015 = vadd.f32 0.0, %v1014
    %v1016 = vpop.f32.mrb[0].mxu0
    %1017 = vmatprep.mubr.f32.mxu0 0.0
    %1018 = vmatmul.mubr.f32.gmra.mrb[0].mxu0 %v768
    %v1019 = vpop.f32.mrb[0].mxu0
    %v1020 = vadd.f32 0.0, %v1019
    %v1021 = vpop.f32.mrb[0].mxu0
    %1022 = vmatprep.mubr.f32.mxu0 0.0
    %1023 = vmatmul.mubr.f32.gmra.mrb[0].mxu0 %v771
    %v1024 = vpop.f32.mrb[0].mxu0
    %v1025 = vadd.f32 0.0, %v1024
    %v1026 = vpop.f32.mrb[0].mxu0
    %1027 = vmatprep.mubr.f32.mxu0 0.0
    %1028 = vmatmul.mubr.f32.gmra.mrb[0].mxu0 %v774
    %v1029 = vpop.f32.mrb[0].mxu0
    %v1030 = vadd.f32 0.0, %v1029
    %v1031 = vpop.f32.mrb[0].mxu0
    %1032 = vmatprep.mubr.f32.mxu0 0.0
    %1033 = vmatmul.mubr.f32.gmra.mrb[0].mxu0 %v777
    %v1034 = vpop.f32.mrb[0].mxu0
    %v1035 = vadd.f32 0.0, %v1034
    %v1036 = vpop.f32.mrb[0].mxu0
    %1037 = vmatprep.mubr.f32.mxu0 0.0
    %1038 = vmatmul.mubr.f32.gmra.mrb[0].mxu0 %v780
    %v1039 = vpop.f32.mrb[0].mxu0
    %v1040 = vadd.f32 0.0, %v1039
    %v1041 = vpop.f32.mrb[0].mxu0
    %1042 = vmatprep.mubr.f32.mxu0 0.0
    %1043 = vmatmul.mubr.f32.gmra.mrb[0].mxu0 %v783
    %v1044 = vpop.f32.mrb[0].mxu0
    %v1045 = vadd.f32 0.0, %v1044
    %v1046 = vpop.f32.mrb[0].mxu0
    %1047 = vmatprep.mubr.f32.mxu0 0.0
    %1048 = vmatmul.mubr.f32.gmra.mrb[0].mxu0 %v786
    %v1049 = vpop.f32.mrb[0].mxu0
    %v1050 = vadd.f32 0.0, %v1049
    %v1051 = vpop.f32.mrb[0].mxu0
    %1052 = vmatprep.mubr.f32.mxu0 0.0
    %1053 = vmatmul.mubr.f32.gmra.mrb[0].mxu0 %v789
    %v1054 = vpop.f32.mrb[0].mxu0
    %v1055 = vadd.f32 0.0, %v1054
    %v1056 = vpop.f32.mrb[0].mxu0
    %1057 = vmatprep.mubr.f32.mxu0 0.0
    %1058 = vmatmul.mubr.f32.gmra.mrb[0].mxu0 %v792
    %v1059 = vpop.f32.mrb[0].mxu0
    %v1060 = vadd.f32 0.0, %v1059
    %v1061 = vpop.f32.mrb[0].mxu0
    %1062 = vmatprep.mubr.f32.mxu0 0.0
    %1063 = vmatmul.mubr.f32.gmra.mrb[0].mxu0 %v795
    %v1064 = vpop.f32.mrb[0].mxu0
    %v1065 = vadd.f32 0.0, %v1064
    %v1066 = vpop.f32.mrb[0].mxu0
    %1067 = vmatprep.mubr.f32.mxu0 0.0
    %1068 = vmatmul.mubr.f32.gmra.mrb[0].mxu0 %v798
    %v1069 = vpop.f32.mrb[0].mxu0
    %v1070 = vadd.f32 0.0, %v1069
    %v1071 = vpop.f32.mrb[0].mxu0
    %1072 = vmatprep.mubr.f32.mxu0 0.0
    %1073 = vmatmul.mubr.f32.gmra.mrb[0].mxu0 %v801
    %v1074 = vpop.f32.mrb[0].mxu0
    %v1075 = vadd.f32 0.0, %v1074
    %v1076 = vpop.f32.mrb[0].mxu0
    %1077 = vmatprep.mubr.f32.mxu0 0.0
    %1078 = vmatmul.mubr.f32.gmra.mrb[0].mxu0 %v804
    %v1079 = vpop.f32.mrb[0].mxu0
    %v1080 = vadd.f32 0.0, %v1079
    %v1081 = vpop.f32.mrb[0].mxu0
    %1082 = vmatprep.mubr.f32.mxu0 0.0
    %1083 = vmatmul.mubr.f32.gmra.mrb[0].mxu0 %v807
    %v1084 = vpop.f32.mrb[0].mxu0
    %v1085 = vadd.f32 0.0, %v1084
    %v1086 = vpop.f32.mrb[0].mxu0
    %1087 = vmatprep.mubr.f32.mxu0 0.0
    %1088 = vmatmul.mubr.f32.gmra.mrb[0].mxu0 %v810
    %v1089 = vpop.f32.mrb[0].mxu0
    %v1090 = vadd.f32 0.0, %v1089
    %v1091 = vpop.f32.mrb[0].mxu0
    %1092 = vmatprep.mubr.f32.mxu0 0.0
    %1093 = vmatmul.mubr.f32.gmra.mrb[0].mxu0 %v813
    %v1094 = vpop.f32.mrb[0].mxu0
    %v1095 = vadd.f32 0.0, %v1094
    %v1096 = vpop.f32.mrb[0].mxu0
    %1097 = vmatprep.mubr.f32.mxu0 0.0
    %1098 = vmatmul.mubr.f32.gmra.mrb[0].mxu0 %v816
    %v1099 = vpop.f32.mrb[0].mxu0
    %v1100 = vadd.f32 0.0, %v1099
    %v1101 = vpop.f32.mrb[0].mxu0
    %1102 = vmatprep.mubr.f32.mxu0 0.0
    %1103 = vmatmul.mubr.f32.gmra.mrb[0].mxu0 %v819
    %v1104 = vpop.f32.mrb[0].mxu0
    %v1105 = vadd.f32 0.0, %v1104
    %v1106 = vpop.f32.mrb[0].mxu0
    %1107 = vmatprep.mubr.f32.mxu0 0.0
    %1108 = vmatmul.mubr.f32.gmra.mrb[0].mxu0 %v822
    %v1109 = vpop.f32.mrb[0].mxu0
    %v1110 = vadd.f32 0.0, %v1109
    %v1111 = vpop.f32.mrb[0].mxu0
    %1112 = vmatprep.mubr.f32.mxu0 0.0
    %1113 = vmatmul.mubr.f32.gmra.mrb[0].mxu0 %v825
    %v1114 = vpop.f32.mrb[0].mxu0
    %v1115 = vadd.f32 0.0, %v1114
    %v1116 = vpop.f32.mrb[0].mxu0
    %1117 = vmatprep.mubr.f32.mxu0 0.0
    %1118 = vmatmul.mubr.f32.gmra.mrb[0].mxu0 %v828
    %v1119 = vpop.f32.mrb[0].mxu0
    %v1120 = vadd.f32 0.0, %v1119
    %v1121 = vpop.f32.mrb[0].mxu0
    %1122 = vmatprep.mubr.f32.mxu0 0.0
    %1123 = vmatmul.mubr.f32.gmra.mrb[0].mxu0 %v831
    %v1124 = vpop.f32.mrb[0].mxu0
    %v1125 = vadd.f32 0.0, %v1124
    %v1126 = vpop.f32.mrb[0].mxu0
    %1127 = vmatprep.mubr.f32.mxu0 0.0
    %1128 = vmatmul.mubr.f32.gmra.mrb[0].mxu0 %v834
    %v1129 = vpop.f32.mrb[0].mxu0
    %v1130 = vadd.f32 0.0, %v1129
    %v1131 = vpop.f32.mrb[0].mxu0
    %1132 = vmatprep.mubr.f32.mxu0 0.0
    %1133 = vmatmul.mubr.f32.gmra.mrb[0].mxu0 %v837
    %v1134 = vpop.f32.mrb[0].mxu0
    %v1135 = vadd.f32 0.0, %v1134
    %v1136 = vpop.f32.mrb[0].mxu0
    %1137 = vmatprep.mubr.f32.mxu0 0.0
    %1138 = vmatmul.mubr.f32.gmra.mrb[0].mxu0 %v840
    %v1139 = vpop.f32.mrb[0].mxu0
    %v1140 = vadd.f32 0.0, %v1139
    %v1141 = vpop.f32.mrb[0].mxu0
    %1142 = vmatprep.mubr.f32.mxu0 0.0
    %1143 = vmatmul.mubr.f32.gmra.mrb[0].mxu0 %v843
    %v1144 = vpop.f32.mrb[0].mxu0
    %v1145 = vadd.f32 0.0, %v1144
    %v1146 = vpop.f32.mrb[0].mxu0
    %1147 = vmatprep.mubr.f32.mxu0 0.0
    %1148 = vmatmul.mubr.f32.gmra.mrb[0].mxu0 %v846
    %v1149 = vpop.f32.mrb[0].mxu0
    %v1150 = vadd.f32 0.0, %v1149
    %v1151 = vpop.f32.mrb[0].mxu0
    %1152 = vdwg.mxu0
    %v1153 = vld [vmem:[%s4] sm:$0xff]
    %v1154 = vld [vmem:[%s4 + $0x8] sm:$0xff]
    %v1155 = vld [vmem:[%s4 + $0x10] sm:$0xff]
    %v1156 = vld [vmem:[%s4 + $0x18] sm:$0xff]
    %v1157 = vld [vmem:[%s4 + $0x20] sm:$0xff]
    %v1158 = vld [vmem:[%s4 + $0x28] sm:$0xff]
    %v1159 = vld [vmem:[%s4 + $0x30] sm:$0xff]
    %v1160 = vld [vmem:[%s4 + $0x38] sm:$0xff]
    %v1162 = vsel %vm703, %v647, 0
    %v1165 = vsel %vm703, %v648, 0
    %v1168 = vsel %vm703, %v649, 0
    %v1171 = vsel %vm703, %v650, 0
    %v1174 = vsel %vm703, %v651, 0
    %v1177 = vsel %vm703, %v652, 0
    %v1180 = vsel %vm703, %v653, 0
    %v1183 = vsel %vm703, %v654, 0
    %v1186 = vsel %vm703, %v655, 0
    %v1189 = vsel %vm703, %v656, 0
    %v1192 = vsel %vm703, %v657, 0
    %v1195 = vsel %vm703, %v658, 0
    %v1198 = vsel %vm703, %v659, 0
    %v1201 = vsel %vm703, %v660, 0
    %v1204 = vsel %vm703, %v661, 0
    %v1207 = vsel %vm703, %v662, 0
    %v1210 = vsel %vm703, %v663, 0
    %v1213 = vsel %vm703, %v664, 0
    %v1216 = vsel %vm703, %v665, 0
    %v1219 = vsel %vm703, %v666, 0
    %v1222 = vsel %vm703, %v667, 0
    %v1225 = vsel %vm703, %v668, 0
    %v1228 = vsel %vm703, %v669, 0
    %v1231 = vsel %vm703, %v670, 0
    %v1234 = vsel %vm703, %v671, 0
    %v1237 = vsel %vm703, %v672, 0
    %v1240 = vsel %vm703, %v673, 0
    %v1243 = vsel %vm703, %v674, 0
    %v1246 = vsel %vm703, %v675, 0
    %v1249 = vsel %vm703, %v676, 0
    %v1252 = vsel %vm703, %v677, 0
    %v1255 = vsel %vm703, %v678, 0
    %v1258 = vsel %vm703, %v679, 0
    %v1261 = vsel %vm703, %v680, 0
    %v1264 = vsel %vm703, %v681, 0
    %v1267 = vsel %vm703, %v682, 0
    %v1270 = vsel %vm703, %v683, 0
    %v1273 = vsel %vm703, %v684, 0
    %v1276 = vsel %vm703, %v685, 0
    %v1279 = vsel %vm703, %v686, 0
    %v1282 = vsel %vm703, %v687, 0
    %v1285 = vsel %vm703, %v688, 0
    %v1288 = vsel %vm703, %v689, 0
    %v1291 = vsel %vm703, %v690, 0
    %v1294 = vsel %vm703, %v691, 0
    %v1297 = vsel %vm703, %v692, 0
    %v1300 = vsel %vm703, %v693, 0
    %v1303 = vsel %vm703, %v694, 0
    %1305 = vmatprep.subr.mxu0 0.0
    %1306 = vmatpush1.msra.mxu0 %v1153
    %1307 = vmatprep.subr.mxu0 0.0
    %1308 = vmatpush1.msra.mxu0 %v1154
    %1309 = vmatprep.subr.mxu0 0.0
    %1310 = vmatpush1.msra.mxu0 %v1155
    %1311 = vmatprep.subr.mxu0 0.0
    %1312 = vmatpush1.msra.mxu0 %v1156
    %1313 = vmatprep.subr.mxu0 0.0
    %1314 = vmatpush1.msra.mxu0 %v1157
    %1315 = vmatprep.subr.mxu0 0.0
    %1316 = vmatpush1.msra.mxu0 %v1158
    %1317 = vmatprep.subr.mxu0 0.0
    %1318 = vmatpush1.msra.mxu0 %v1159
    %1319 = vmatprep.subr.mxu0 0.0
    %1320 = vmatpush1.msra.mxu0 %v1160
    %1321 = vmatprep.subr.mxu0 0.0
    %1322 = vmatpush1.msra.mxu0 0.0
    %1323 = vmatprep.subr.mxu0 0.0
    %1324 = vmatpush1.msra.mxu0 0.0
    %1325 = vmatprep.subr.mxu0 0.0
    %1326 = vmatpush1.msra.mxu0 0.0
    %1327 = vmatprep.subr.mxu0 0.0
    %1328 = vmatpush1.msra.mxu0 0.0
    %1329 = vmatprep.subr.mxu0 0.0
    %1330 = vmatpush1.msra.mxu0 0.0
    %1331 = vmatprep.subr.mxu0 0.0
    %1332 = vmatpush1.msra.mxu0 0.0
    %1333 = vmatprep.subr.mxu0 0.0
    %1334 = vmatpush1.msra.mxu0 0.0
    %1335 = vmatprep.subr.mxu0 0.0
    %1336 = vmatpush1.msra.mxu0 0.0
    %1337 = vmatprep.subr.mxu0 0.0
    %1338 = vmatpush1.msra.mxu0 0.0
    %1339 = vmatprep.subr.mxu0 0.0
    %1340 = vmatpush1.msra.mxu0 0.0
    %1341 = vmatprep.subr.mxu0 0.0
    %1342 = vmatpush1.msra.mxu0 0.0
    %1343 = vmatprep.subr.mxu0 0.0
    %1344 = vmatpush1.msra.mxu0 0.0
    %1345 = vmatprep.subr.mxu0 0.0
    %1346 = vmatpush1.msra.mxu0 0.0
    %1347 = vmatprep.subr.mxu0 0.0
    %1348 = vmatpush1.msra.mxu0 0.0
    %1349 = vmatprep.subr.mxu0 0.0
    %1350 = vmatpush1.msra.mxu0 0.0
    %1351 = vmatprep.subr.mxu0 0.0
    %1352 = vmatpush1.msra.mxu0 0.0
    %1353 = vmatprep.subr.mxu0 0.0
    %1354 = vmatpush1.msra.mxu0 0.0
    %1355 = vmatprep.subr.mxu0 0.0
    %1356 = vmatpush1.msra.mxu0 0.0
    %1357 = vmatprep.subr.mxu0 0.0
    %1358 = vmatpush1.msra.mxu0 0.0
    %1359 = vmatprep.subr.mxu0 0.0
    %1360 = vmatpush1.msra.mxu0 0.0
    %1361 = vmatprep.subr.mxu0 0.0
    %1362 = vmatpush1.msra.mxu0 0.0
    %1363 = vmatprep.subr.mxu0 0.0
    %1364 = vmatpush1.msra.mxu0 0.0
    %1365 = vmatprep.subr.mxu0 0.0
    %1366 = vmatpush1.msra.mxu0 0.0
    %1367 = vmatprep.subr.mxu0 0.0
    %1368 = vmatpush1.msra.mxu0 0.0
    %1369 = vmatprep.mubr.f32.mxu0 0.0
    %1370 = vmatmul.mubr.f32.gmra.mrb[0].mxu0 %v1162
    %v1371 = vpop.f32.mrb[0].mxu0
    %v1372 = vadd.f32 0.0, %v1371
    %v1373 = vpop.f32.mrb[0].mxu0
    %1374 = vmatprep.mubr.f32.mxu0 0.0
    %1375 = vmatmul.mubr.f32.gmra.mrb[0].mxu0 %v1165
    %v1376 = vpop.f32.mrb[0].mxu0
    %v1377 = vadd.f32 0.0, %v1376
    %v1378 = vpop.f32.mrb[0].mxu0
    %1379 = vmatprep.mubr.f32.mxu0 0.0
    %1380 = vmatmul.mubr.f32.gmra.mrb[0].mxu0 %v1168
    %v1381 = vpop.f32.mrb[0].mxu0
    %v1382 = vadd.f32 0.0, %v1381
    %v1383 = vpop.f32.mrb[0].mxu0
    %1384 = vmatprep.mubr.f32.mxu0 0.0
    %1385 = vmatmul.mubr.f32.gmra.mrb[0].mxu0 %v1171
    %v1386 = vpop.f32.mrb[0].mxu0
    %v1387 = vadd.f32 0.0, %v1386
    %v1388 = vpop.f32.mrb[0].mxu0
    %1389 = vmatprep.mubr.f32.mxu0 0.0
    %1390 = vmatmul.mubr.f32.gmra.mrb[0].mxu0 %v1174
    %v1391 = vpop.f32.mrb[0].mxu0
    %v1392 = vadd.f32 0.0, %v1391
    %v1393 = vpop.f32.mrb[0].mxu0
    %1394 = vmatprep.mubr.f32.mxu0 0.0
    %1395 = vmatmul.mubr.f32.gmra.mrb[0].mxu0 %v1177
    %v1396 = vpop.f32.mrb[0].mxu0
    %v1397 = vadd.f32 0.0, %v1396
    %v1398 = vpop.f32.mrb[0].mxu0
    %1399 = vmatprep.mubr.f32.mxu0 0.0
    %1400 = vmatmul.mubr.f32.gmra.mrb[0].mxu0 %v1180
    %v1401 = vpop.f32.mrb[0].mxu0
    %v1402 = vadd.f32 0.0, %v1401
    %v1403 = vpop.f32.mrb[0].mxu0
    %1404 = vmatprep.mubr.f32.mxu0 0.0
    %1405 = vmatmul.mubr.f32.gmra.mrb[0].mxu0 %v1183
    %v1406 = vpop.f32.mrb[0].mxu0
    %v1407 = vadd.f32 0.0, %v1406
    %v1408 = vpop.f32.mrb[0].mxu0
    %1409 = vmatprep.mubr.f32.mxu0 0.0
    %1410 = vmatmul.mubr.f32.gmra.mrb[0].mxu0 %v1186
    %v1411 = vpop.f32.mrb[0].mxu0
    %v1412 = vadd.f32 0.0, %v1411
    %v1413 = vpop.f32.mrb[0].mxu0
    %1414 = vmatprep.mubr.f32.mxu0 0.0
    %1415 = vmatmul.mubr.f32.gmra.mrb[0].mxu0 %v1189
    %v1416 = vpop.f32.mrb[0].mxu0
    %v1417 = vadd.f32 0.0, %v1416
    %v1418 = vpop.f32.mrb[0].mxu0
    %1419 = vmatprep.mubr.f32.mxu0 0.0
    %1420 = vmatmul.mubr.f32.gmra.mrb[0].mxu0 %v1192
    %v1421 = vpop.f32.mrb[0].mxu0
    %v1422 = vadd.f32 0.0, %v1421
    %v1423 = vpop.f32.mrb[0].mxu0
    %1424 = vmatprep.mubr.f32.mxu0 0.0
    %1425 = vmatmul.mubr.f32.gmra.mrb[0].mxu0 %v1195
    %v1426 = vpop.f32.mrb[0].mxu0
    %v1427 = vadd.f32 0.0, %v1426
    %v1428 = vpop.f32.mrb[0].mxu0
    %1429 = vmatprep.mubr.f32.mxu0 0.0
    %1430 = vmatmul.mubr.f32.gmra.mrb[0].mxu0 %v1198
    %v1431 = vpop.f32.mrb[0].mxu0
    %v1432 = vadd.f32 0.0, %v1431
    %v1433 = vpop.f32.mrb[0].mxu0
    %1434 = vmatprep.mubr.f32.mxu0 0.0
    %1435 = vmatmul.mubr.f32.gmra.mrb[0].mxu0 %v1201
    %v1436 = vpop.f32.mrb[0].mxu0
    %v1437 = vadd.f32 0.0, %v1436
    %v1438 = vpop.f32.mrb[0].mxu0
    %1439 = vmatprep.mubr.f32.mxu0 0.0
    %1440 = vmatmul.mubr.f32.gmra.mrb[0].mxu0 %v1204
    %v1441 = vpop.f32.mrb[0].mxu0
    %v1442 = vadd.f32 0.0, %v1441
    %v1443 = vpop.f32.mrb[0].mxu0
    %1444 = vmatprep.mubr.f32.mxu0 0.0
    %1445 = vmatmul.mubr.f32.gmra.mrb[0].mxu0 %v1207
    %v1446 = vpop.f32.mrb[0].mxu0
    %v1447 = vadd.f32 0.0, %v1446
    %v1448 = vpop.f32.mrb[0].mxu0
    %1449 = vmatprep.mubr.f32.mxu0 0.0
    %1450 = vmatmul.mubr.f32.gmra.mrb[0].mxu0 %v1210
    %v1451 = vpop.f32.mrb[0].mxu0
    %v1452 = vadd.f32 0.0, %v1451
    %v1453 = vpop.f32.mrb[0].mxu0
    %1454 = vmatprep.mubr.f32.mxu0 0.0
    %1455 = vmatmul.mubr.f32.gmra.mrb[0].mxu0 %v1213
    %v1456 = vpop.f32.mrb[0].mxu0
    %v1457 = vadd.f32 0.0, %v1456
    %v1458 = vpop.f32.mrb[0].mxu0
    %1459 = vmatprep.mubr.f32.mxu0 0.0
    %1460 = vmatmul.mubr.f32.gmra.mrb[0].mxu0 %v1216
    %v1461 = vpop.f32.mrb[0].mxu0
    %v1462 = vadd.f32 0.0, %v1461
    %v1463 = vpop.f32.mrb[0].mxu0
    %1464 = vmatprep.mubr.f32.mxu0 0.0
    %1465 = vmatmul.mubr.f32.gmra.mrb[0].mxu0 %v1219
    %v1466 = vpop.f32.mrb[0].mxu0
    %v1467 = vadd.f32 0.0, %v1466
    %v1468 = vpop.f32.mrb[0].mxu0
    %1469 = vmatprep.mubr.f32.mxu0 0.0
    %1470 = vmatmul.mubr.f32.gmra.mrb[0].mxu0 %v1222
    %v1471 = vpop.f32.mrb[0].mxu0
    %v1472 = vadd.f32 0.0, %v1471
    %v1473 = vpop.f32.mrb[0].mxu0
    %1474 = vmatprep.mubr.f32.mxu0 0.0
    %1475 = vmatmul.mubr.f32.gmra.mrb[0].mxu0 %v1225
    %v1476 = vpop.f32.mrb[0].mxu0
    %v1477 = vadd.f32 0.0, %v1476
    %v1478 = vpop.f32.mrb[0].mxu0
    %1479 = vmatprep.mubr.f32.mxu0 0.0
    %1480 = vmatmul.mubr.f32.gmra.mrb[0].mxu0 %v1228
    %v1481 = vpop.f32.mrb[0].mxu0
    %v1482 = vadd.f32 0.0, %v1481
    %v1483 = vpop.f32.mrb[0].mxu0
    %1484 = vmatprep.mubr.f32.mxu0 0.0
    %1485 = vmatmul.mubr.f32.gmra.mrb[0].mxu0 %v1231
    %v1486 = vpop.f32.mrb[0].mxu0
    %v1487 = vadd.f32 0.0, %v1486
    %v1488 = vpop.f32.mrb[0].mxu0
    %1489 = vmatprep.mubr.f32.mxu0 0.0
    %1490 = vmatmul.mubr.f32.gmra.mrb[0].mxu0 %v1234
    %v1491 = vpop.f32.mrb[0].mxu0
    %v1492 = vadd.f32 0.0, %v1491
    %v1493 = vpop.f32.mrb[0].mxu0
    %1494 = vmatprep.mubr.f32.mxu0 0.0
    %1495 = vmatmul.mubr.f32.gmra.mrb[0].mxu0 %v1237
    %v1496 = vpop.f32.mrb[0].mxu0
    %v1497 = vadd.f32 0.0, %v1496
    %v1498 = vpop.f32.mrb[0].mxu0
    %1499 = vmatprep.mubr.f32.mxu0 0.0
    %1500 = vmatmul.mubr.f32.gmra.mrb[0].mxu0 %v1240
    %v1501 = vpop.f32.mrb[0].mxu0
    %v1502 = vadd.f32 0.0, %v1501
    %v1503 = vpop.f32.mrb[0].mxu0
    %1504 = vmatprep.mubr.f32.mxu0 0.0
    %1505 = vmatmul.mubr.f32.gmra.mrb[0].mxu0 %v1243
    %v1506 = vpop.f32.mrb[0].mxu0
    %v1507 = vadd.f32 0.0, %v1506
    %v1508 = vpop.f32.mrb[0].mxu0
    %1509 = vmatprep.mubr.f32.mxu0 0.0
    %1510 = vmatmul.mubr.f32.gmra.mrb[0].mxu0 %v1246
    %v1511 = vpop.f32.mrb[0].mxu0
    %v1512 = vadd.f32 0.0, %v1511
    %v1513 = vpop.f32.mrb[0].mxu0
    %1514 = vmatprep.mubr.f32.mxu0 0.0
    %1515 = vmatmul.mubr.f32.gmra.mrb[0].mxu0 %v1249
    %v1516 = vpop.f32.mrb[0].mxu0
    %v1517 = vadd.f32 0.0, %v1516
    %v1518 = vpop.f32.mrb[0].mxu0
    %1519 = vmatprep.mubr.f32.mxu0 0.0
    %1520 = vmatmul.mubr.f32.gmra.mrb[0].mxu0 %v1252
    %v1521 = vpop.f32.mrb[0].mxu0
    %v1522 = vadd.f32 0.0, %v1521
    %v1523 = vpop.f32.mrb[0].mxu0
    %1524 = vmatprep.mubr.f32.mxu0 0.0
    %1525 = vmatmul.mubr.f32.gmra.mrb[0].mxu0 %v1255
    %v1526 = vpop.f32.mrb[0].mxu0
    %v1527 = vadd.f32 0.0, %v1526
    %v1528 = vpop.f32.mrb[0].mxu0
    %1529 = vmatprep.mubr.f32.mxu0 0.0
    %1530 = vmatmul.mubr.f32.gmra.mrb[0].mxu0 %v1258
    %v1531 = vpop.f32.mrb[0].mxu0
    %v1532 = vadd.f32 0.0, %v1531
    %v1533 = vpop.f32.mrb[0].mxu0
    %1534 = vmatprep.mubr.f32.mxu0 0.0
    %1535 = vmatmul.mubr.f32.gmra.mrb[0].mxu0 %v1261
    %v1536 = vpop.f32.mrb[0].mxu0
    %v1537 = vadd.f32 0.0, %v1536
    %v1538 = vpop.f32.mrb[0].mxu0
    %1539 = vmatprep.mubr.f32.mxu0 0.0
    %1540 = vmatmul.mubr.f32.gmra.mrb[0].mxu0 %v1264
    %v1541 = vpop.f32.mrb[0].mxu0
    %v1542 = vadd.f32 0.0, %v1541
    %v1543 = vpop.f32.mrb[0].mxu0
    %1544 = vmatprep.mubr.f32.mxu0 0.0
    %1545 = vmatmul.mubr.f32.gmra.mrb[0].mxu0 %v1267
    %v1546 = vpop.f32.mrb[0].mxu0
    %v1547 = vadd.f32 0.0, %v1546
    %v1548 = vpop.f32.mrb[0].mxu0
    %1549 = vmatprep.mubr.f32.mxu0 0.0
    %1550 = vmatmul.mubr.f32.gmra.mrb[0].mxu0 %v1270
    %v1551 = vpop.f32.mrb[0].mxu0
    %v1552 = vadd.f32 0.0, %v1551
    %v1553 = vpop.f32.mrb[0].mxu0
    %1554 = vmatprep.mubr.f32.mxu0 0.0
    %1555 = vmatmul.mubr.f32.gmra.mrb[0].mxu0 %v1273
    %v1556 = vpop.f32.mrb[0].mxu0
    %v1557 = vadd.f32 0.0, %v1556
    %v1558 = vpop.f32.mrb[0].mxu0
    %1559 = vmatprep.mubr.f32.mxu0 0.0
    %1560 = vmatmul.mubr.f32.gmra.mrb[0].mxu0 %v1276
    %v1561 = vpop.f32.mrb[0].mxu0
    %v1562 = vadd.f32 0.0, %v1561
    %v1563 = vpop.f32.mrb[0].mxu0
    %1564 = vmatprep.mubr.f32.mxu0 0.0
    %1565 = vmatmul.mubr.f32.gmra.mrb[0].mxu0 %v1279
    %v1566 = vpop.f32.mrb[0].mxu0
    %v1567 = vadd.f32 0.0, %v1566
    %v1568 = vpop.f32.mrb[0].mxu0
    %1569 = vmatprep.mubr.f32.mxu0 0.0
    %1570 = vmatmul.mubr.f32.gmra.mrb[0].mxu0 %v1282
    %v1571 = vpop.f32.mrb[0].mxu0
    %v1572 = vadd.f32 0.0, %v1571
    %v1573 = vpop.f32.mrb[0].mxu0
    %1574 = vmatprep.mubr.f32.mxu0 0.0
    %1575 = vmatmul.mubr.f32.gmra.mrb[0].mxu0 %v1285
    %v1576 = vpop.f32.mrb[0].mxu0
    %v1577 = vadd.f32 0.0, %v1576
    %v1578 = vpop.f32.mrb[0].mxu0
    %1579 = vmatprep.mubr.f32.mxu0 0.0
    %1580 = vmatmul.mubr.f32.gmra.mrb[0].mxu0 %v1288
    %v1581 = vpop.f32.mrb[0].mxu0
    %v1582 = vadd.f32 0.0, %v1581
    %v1583 = vpop.f32.mrb[0].mxu0
    %1584 = vmatprep.mubr.f32.mxu0 0.0
    %1585 = vmatmul.mubr.f32.gmra.mrb[0].mxu0 %v1291
    %v1586 = vpop.f32.mrb[0].mxu0
    %v1587 = vadd.f32 0.0, %v1586
    %v1588 = vpop.f32.mrb[0].mxu0
    %1589 = vmatprep.mubr.f32.mxu0 0.0
    %1590 = vmatmul.mubr.f32.gmra.mrb[0].mxu0 %v1294
    %v1591 = vpop.f32.mrb[0].mxu0
    %v1592 = vadd.f32 0.0, %v1591
    %v1593 = vpop.f32.mrb[0].mxu0
    %1594 = vmatprep.mubr.f32.mxu0 0.0
    %1595 = vmatmul.mubr.f32.gmra.mrb[0].mxu0 %v1297
    %v1596 = vpop.f32.mrb[0].mxu0
    %v1597 = vadd.f32 0.0, %v1596
    %v1598 = vpop.f32.mrb[0].mxu0
    %1599 = vmatprep.mubr.f32.mxu0 0.0
    %1600 = vmatmul.mubr.f32.gmra.mrb[0].mxu0 %v1300
    %v1601 = vpop.f32.mrb[0].mxu0
    %v1602 = vadd.f32 0.0, %v1601
    %v1603 = vpop.f32.mrb[0].mxu0
    %1604 = vmatprep.mubr.f32.mxu0 0.0
    %1605 = vmatmul.mubr.f32.gmra.mrb[0].mxu0 %v1303
    %v1606 = vpop.f32.mrb[0].mxu0
    %v1607 = vadd.f32 0.0, %v1606
    %v1608 = vpop.f32.mrb[0].mxu0
    %1609 = vdwg.mxu0
    %v1610 = vmul.f32 %v915, %v1372
    %v1611 = vmul.f32 %v920, %v1377
    %v1612 = vmul.f32 %v925, %v1382
    %v1613 = vmul.f32 %v930, %v1387
    %v1614 = vmul.f32 %v935, %v1392
    %v1615 = vmul.f32 %v940, %v1397
    %v1616 = vmul.f32 %v945, %v1402
    %v1617 = vmul.f32 %v950, %v1407
    %v1618 = vmul.f32 %v955, %v1412
    %v1619 = vmul.f32 %v960, %v1417
    %v1620 = vmul.f32 %v965, %v1422
    %v1621 = vmul.f32 %v970, %v1427
    %v1622 = vmul.f32 %v975, %v1432
    %v1623 = vmul.f32 %v980, %v1437
    %v1624 = vmul.f32 %v985, %v1442
    %v1625 = vmul.f32 %v990, %v1447
    %v1626 = vmul.f32 %v995, %v1452
    %v1627 = vmul.f32 %v1000, %v1457
    %v1628 = vmul.f32 %v1005, %v1462
    %v1629 = vmul.f32 %v1010, %v1467
    %v1630 = vmul.f32 %v1015, %v1472
    %v1631 = vmul.f32 %v1020, %v1477
    %v1632 = vmul.f32 %v1025, %v1482
    %v1633 = vmul.f32 %v1030, %v1487
    %v1634 = vmul.f32 %v1035, %v1492
    %v1635 = vmul.f32 %v1040, %v1497
    %v1636 = vmul.f32 %v1045, %v1502
    %v1637 = vmul.f32 %v1050, %v1507
    %v1638 = vmul.f32 %v1055, %v1512
    %v1639 = vmul.f32 %v1060, %v1517
    %v1640 = vmul.f32 %v1065, %v1522
    %v1641 = vmul.f32 %v1070, %v1527
    %v1642 = vmul.f32 %v1075, %v1532
    %v1643 = vmul.f32 %v1080, %v1537
    %v1644 = vmul.f32 %v1085, %v1542
    %v1645 = vmul.f32 %v1090, %v1547
    %v1646 = vmul.f32 %v1095, %v1552
    %v1647 = vmul.f32 %v1100, %v1557
    %v1648 = vmul.f32 %v1105, %v1562
    %v1649 = vmul.f32 %v1110, %v1567
    %v1650 = vmul.f32 %v1115, %v1572
    %v1651 = vmul.f32 %v1120, %v1577
    %v1652 = vmul.f32 %v1125, %v1582
    %v1653 = vmul.f32 %v1130, %v1587
    %v1654 = vmul.f32 %v1135, %v1592
    %v1655 = vmul.f32 %v1140, %v1597
    %v1656 = vmul.f32 %v1145, %v1602
    %v1657 = vmul.f32 %v1150, %v1607
    %1658 = vadd.xlane.f32.xlu0 %v1610
    %v1659 = vpop.xlane.xlu0 %1658
    %1660 = vadd.xlane.f32.xlu0 %v1611
    %v1661 = vpop.xlane.xlu0 %1660
    %1662 = vadd.xlane.f32.xlu0 %v1612
    %v1663 = vpop.xlane.xlu0 %1662
    %1664 = vadd.xlane.f32.xlu0 %v1613
    %v1665 = vpop.xlane.xlu0 %1664
    %1666 = vadd.xlane.f32.xlu0 %v1614
    %v1667 = vpop.xlane.xlu0 %1666
    %1668 = vadd.xlane.f32.xlu0 %v1615
    %v1669 = vpop.xlane.xlu0 %1668
    %1670 = vadd.xlane.f32.xlu0 %v1616
    %v1671 = vpop.xlane.xlu0 %1670
    %1672 = vadd.xlane.f32.xlu0 %v1617
    %v1673 = vpop.xlane.xlu0 %1672
    %1674 = vadd.xlane.f32.xlu0 %v1618
    %v1675 = vpop.xlane.xlu0 %1674
    %1676 = vadd.xlane.f32.xlu0 %v1619
    %v1677 = vpop.xlane.xlu0 %1676
    %1678 = vadd.xlane.f32.xlu0 %v1620
    %v1679 = vpop.xlane.xlu0 %1678
    %1680 = vadd.xlane.f32.xlu0 %v1621
    %v1681 = vpop.xlane.xlu0 %1680
    %1682 = vadd.xlane.f32.xlu0 %v1622
    %v1683 = vpop.xlane.xlu0 %1682
    %1684 = vadd.xlane.f32.xlu0 %v1623
    %v1685 = vpop.xlane.xlu0 %1684
    %1686 = vadd.xlane.f32.xlu0 %v1624
    %v1687 = vpop.xlane.xlu0 %1686
    %1688 = vadd.xlane.f32.xlu0 %v1625
    %v1689 = vpop.xlane.xlu0 %1688
    %1690 = vadd.xlane.f32.xlu0 %v1626
    %v1691 = vpop.xlane.xlu0 %1690
    %1692 = vadd.xlane.f32.xlu0 %v1627
    %v1693 = vpop.xlane.xlu0 %1692
    %1694 = vadd.xlane.f32.xlu0 %v1628
    %v1695 = vpop.xlane.xlu0 %1694
    %1696 = vadd.xlane.f32.xlu0 %v1629
    %v1697 = vpop.xlane.xlu0 %1696
    %1698 = vadd.xlane.f32.xlu0 %v1630
    %v1699 = vpop.xlane.xlu0 %1698
    %1700 = vadd.xlane.f32.xlu0 %v1631
    %v1701 = vpop.xlane.xlu0 %1700
    %1702 = vadd.xlane.f32.xlu0 %v1632
    %v1703 = vpop.xlane.xlu0 %1702
    %1704 = vadd.xlane.f32.xlu0 %v1633
    %v1705 = vpop.xlane.xlu0 %1704
    %1706 = vadd.xlane.f32.xlu0 %v1634
    %v1707 = vpop.xlane.xlu0 %1706
    %1708 = vadd.xlane.f32.xlu0 %v1635
    %v1709 = vpop.xlane.xlu0 %1708
    %1710 = vadd.xlane.f32.xlu0 %v1636
    %v1711 = vpop.xlane.xlu0 %1710
    %1712 = vadd.xlane.f32.xlu0 %v1637
    %v1713 = vpop.xlane.xlu0 %1712
    %1714 = vadd.xlane.f32.xlu0 %v1638
    %v1715 = vpop.xlane.xlu0 %1714
    %1716 = vadd.xlane.f32.xlu0 %v1639
    %v1717 = vpop.xlane.xlu0 %1716
    %1718 = vadd.xlane.f32.xlu0 %v1640
    %v1719 = vpop.xlane.xlu0 %1718
    %1720 = vadd.xlane.f32.xlu0 %v1641
    %v1721 = vpop.xlane.xlu0 %1720
    %1722 = vadd.xlane.f32.xlu0 %v1642
    %v1723 = vpop.xlane.xlu0 %1722
    %1724 = vadd.xlane.f32.xlu0 %v1643
    %v1725 = vpop.xlane.xlu0 %1724
    %1726 = vadd.xlane.f32.xlu0 %v1644
    %v1727 = vpop.xlane.xlu0 %1726
    %1728 = vadd.xlane.f32.xlu0 %v1645
    %v1729 = vpop.xlane.xlu0 %1728
    %1730 = vadd.xlane.f32.xlu0 %v1646
    %v1731 = vpop.xlane.xlu0 %1730
    %1732 = vadd.xlane.f32.xlu0 %v1647
    %v1733 = vpop.xlane.xlu0 %1732
    %1734 = vadd.xlane.f32.xlu0 %v1648
    %v1735 = vpop.xlane.xlu0 %1734
    %1736 = vadd.xlane.f32.xlu0 %v1649
    %v1737 = vpop.xlane.xlu0 %1736
    %1738 = vadd.xlane.f32.xlu0 %v1650
    %v1739 = vpop.xlane.xlu0 %1738
    %1740 = vadd.xlane.f32.xlu0 %v1651
    %v1741 = vpop.xlane.xlu0 %1740
    %1742 = vadd.xlane.f32.xlu0 %v1652
    %v1743 = vpop.xlane.xlu0 %1742
    %1744 = vadd.xlane.f32.xlu0 %v1653
    %v1745 = vpop.xlane.xlu0 %1744
    %1746 = vadd.xlane.f32.xlu0 %v1654
    %v1747 = vpop.xlane.xlu0 %1746
    %1748 = vadd.xlane.f32.xlu0 %v1655
    %v1749 = vpop.xlane.xlu0 %1748
    %1750 = vadd.xlane.f32.xlu0 %v1656
    %v1751 = vpop.xlane.xlu0 %1750
    %1752 = vadd.xlane.f32.xlu0 %v1657
    %v1753 = vpop.xlane.xlu0 %1752
    %v1754 = vld [vmem:[%s2] sm:$0x7]
    %v1755 = vmax.f32 %v1659, 0.0
    %v1756 = vmax.f32 %v1661, 0.0
    %v1757 = vmax.f32 %v1663, 0.0
    %v1758 = vmax.f32 %v1665, 0.0
    %v1759 = vmax.f32 %v1667, 0.0
    %v1760 = vmax.f32 %v1669, 0.0
    %v1761 = vmax.f32 %v1671, 0.0
    %v1762 = vmax.f32 %v1673, 0.0
    %v1763 = vmax.f32 %v1675, 0.0
    %v1764 = vmax.f32 %v1677, 0.0
    %v1765 = vmax.f32 %v1679, 0.0
    %v1766 = vmax.f32 %v1681, 0.0
    %v1767 = vmax.f32 %v1683, 0.0
    %v1768 = vmax.f32 %v1685, 0.0
    %v1769 = vmax.f32 %v1687, 0.0
    %v1770 = vmax.f32 %v1689, 0.0
    %v1771 = vmax.f32 %v1691, 0.0
    %v1772 = vmax.f32 %v1693, 0.0
    %v1773 = vmax.f32 %v1695, 0.0
    %v1774 = vmax.f32 %v1697, 0.0
    %v1775 = vmax.f32 %v1699, 0.0
    %v1776 = vmax.f32 %v1701, 0.0
    %v1777 = vmax.f32 %v1703, 0.0
    %v1778 = vmax.f32 %v1705, 0.0
    %v1779 = vmax.f32 %v1707, 0.0
    %v1780 = vmax.f32 %v1709, 0.0
    %v1781 = vmax.f32 %v1711, 0.0
    %v1782 = vmax.f32 %v1713, 0.0
    %v1783 = vmax.f32 %v1715, 0.0
    %v1784 = vmax.f32 %v1717, 0.0
    %v1785 = vmax.f32 %v1719, 0.0
    %v1786 = vmax.f32 %v1721, 0.0
    %v1787 = vmax.f32 %v1723, 0.0
    %v1788 = vmax.f32 %v1725, 0.0
    %v1789 = vmax.f32 %v1727, 0.0
    %v1790 = vmax.f32 %v1729, 0.0
    %v1791 = vmax.f32 %v1731, 0.0
    %v1792 = vmax.f32 %v1733, 0.0
    %v1793 = vmax.f32 %v1735, 0.0
    %v1794 = vmax.f32 %v1737, 0.0
    %v1795 = vmax.f32 %v1739, 0.0
    %v1796 = vmax.f32 %v1741, 0.0
    %v1797 = vmax.f32 %v1743, 0.0
    %v1798 = vmax.f32 %v1745, 0.0
    %v1799 = vmax.f32 %v1747, 0.0
    %v1800 = vmax.f32 %v1749, 0.0
    %v1801 = vmax.f32 %v1751, 0.0
    %v1802 = vmax.f32 %v1753, 0.0
    %v1804 = vlaneseq
    %v1805 = vshrl.u32 %v1804, 7
    %v1806 = vsub.s32 0, %v1805
    %v1807 = vrot.slane %v1754, %v1806
    %1809 = vbcast.lane.b32.xlu0 %v1807, 256
    %v1810 = vpop.permute.xlu0 %1809
    %s1812 = sor.u32 256, 8
    %1813 = vbcast.lane.b32.xlu0 %v1807, %s1812
    %v1814 = vpop.permute.xlu0 %1813
    %s1816 = sor.u32 256, 16
    %1817 = vbcast.lane.b32.xlu0 %v1807, %s1816
    %v1818 = vpop.permute.xlu0 %1817
    %s1820 = sor.u32 256, 24
    %1821 = vbcast.lane.b32.xlu0 %v1807, %s1820
    %v1822 = vpop.permute.xlu0 %1821
    %s1824 = sor.u32 256, 32
    %1825 = vbcast.lane.b32.xlu0 %v1807, %s1824
    %v1826 = vpop.permute.xlu0 %1825
    %s1828 = sor.u32 256, 40
    %1829 = vbcast.lane.b32.xlu0 %v1807, %s1828
    %v1830 = vpop.permute.xlu0 %1829
    %s1832 = sor.u32 256, 48
    %1833 = vbcast.lane.b32.xlu0 %v1807, %s1832
    %v1834 = vpop.permute.xlu0 %1833
    %s1836 = sor.u32 256, 56
    %1837 = vbcast.lane.b32.xlu0 %v1807, %s1836
    %v1838 = vpop.permute.xlu0 %1837
    %s1840 = sor.u32 256, 64
    %1841 = vbcast.lane.b32.xlu0 %v1807, %s1840
    %v1842 = vpop.permute.xlu0 %1841
    %s1844 = sor.u32 256, 72
    %1845 = vbcast.lane.b32.xlu0 %v1807, %s1844
    %v1846 = vpop.permute.xlu0 %1845
    %s1848 = sor.u32 256, 80
    %1849 = vbcast.lane.b32.xlu0 %v1807, %s1848
    %v1850 = vpop.permute.xlu0 %1849
    %s1852 = sor.u32 256, 88
    %1853 = vbcast.lane.b32.xlu0 %v1807, %s1852
    %v1854 = vpop.permute.xlu0 %1853
    %s1856 = sor.u32 256, 96
    %1857 = vbcast.lane.b32.xlu0 %v1807, %s1856
    %v1858 = vpop.permute.xlu0 %1857
    %s1860 = sor.u32 256, 104
    %1861 = vbcast.lane.b32.xlu0 %v1807, %s1860
    %v1862 = vpop.permute.xlu0 %1861
    %s1864 = sor.u32 256, 112
    %1865 = vbcast.lane.b32.xlu0 %v1807, %s1864
    %v1866 = vpop.permute.xlu0 %1865
    %s1868 = sor.u32 256, 120
    %1869 = vbcast.lane.b32.xlu0 %v1807, %s1868
    %v1870 = vpop.permute.xlu0 %1869
    %v1871 = vlaneseq
    %v1872 = vshrl.u32 %v1871, 7
    %v1873 = vsub.s32 1, %v1872
    %v1874 = vrot.slane %v1754, %v1873
    %1876 = vbcast.lane.b32.xlu0 %v1874, 256
    %v1877 = vpop.permute.xlu0 %1876
    %s1879 = sor.u32 256, 8
    %1880 = vbcast.lane.b32.xlu0 %v1874, %s1879
    %v1881 = vpop.permute.xlu0 %1880
    %s1883 = sor.u32 256, 16
    %1884 = vbcast.lane.b32.xlu0 %v1874, %s1883
    %v1885 = vpop.permute.xlu0 %1884
    %s1887 = sor.u32 256, 24
    %1888 = vbcast.lane.b32.xlu0 %v1874, %s1887
    %v1889 = vpop.permute.xlu0 %1888
    %s1891 = sor.u32 256, 32
    %1892 = vbcast.lane.b32.xlu0 %v1874, %s1891
    %v1893 = vpop.permute.xlu0 %1892
    %s1895 = sor.u32 256, 40
    %1896 = vbcast.lane.b32.xlu0 %v1874, %s1895
    %v1897 = vpop.permute.xlu0 %1896
    %s1899 = sor.u32 256, 48
    %1900 = vbcast.lane.b32.xlu0 %v1874, %s1899
    %v1901 = vpop.permute.xlu0 %1900
    %s1903 = sor.u32 256, 56
    %1904 = vbcast.lane.b32.xlu0 %v1874, %s1903
    %v1905 = vpop.permute.xlu0 %1904
    %s1907 = sor.u32 256, 64
    %1908 = vbcast.lane.b32.xlu0 %v1874, %s1907
    %v1909 = vpop.permute.xlu0 %1908
    %s1911 = sor.u32 256, 72
    %1912 = vbcast.lane.b32.xlu0 %v1874, %s1911
    %v1913 = vpop.permute.xlu0 %1912
    %s1915 = sor.u32 256, 80
    %1916 = vbcast.lane.b32.xlu0 %v1874, %s1915
    %v1917 = vpop.permute.xlu0 %1916
    %s1919 = sor.u32 256, 88
    %1920 = vbcast.lane.b32.xlu0 %v1874, %s1919
    %v1921 = vpop.permute.xlu0 %1920
    %s1923 = sor.u32 256, 96
    %1924 = vbcast.lane.b32.xlu0 %v1874, %s1923
    %v1925 = vpop.permute.xlu0 %1924
    %s1927 = sor.u32 256, 104
    %1928 = vbcast.lane.b32.xlu0 %v1874, %s1927
    %v1929 = vpop.permute.xlu0 %1928
    %s1931 = sor.u32 256, 112
    %1932 = vbcast.lane.b32.xlu0 %v1874, %s1931
    %v1933 = vpop.permute.xlu0 %1932
    %s1935 = sor.u32 256, 120
    %1936 = vbcast.lane.b32.xlu0 %v1874, %s1935
    %v1937 = vpop.permute.xlu0 %1936
    %v1938 = vlaneseq
    %v1939 = vshrl.u32 %v1938, 7
    %v1940 = vsub.s32 2, %v1939
    %v1941 = vrot.slane %v1754, %v1940
    %1943 = vbcast.lane.b32.xlu0 %v1941, 256
    %v1944 = vpop.permute.xlu0 %1943
    %s1946 = sor.u32 256, 8
    %1947 = vbcast.lane.b32.xlu0 %v1941, %s1946
    %v1948 = vpop.permute.xlu0 %1947
    %s1950 = sor.u32 256, 16
    %1951 = vbcast.lane.b32.xlu0 %v1941, %s1950
    %v1952 = vpop.permute.xlu0 %1951
    %s1954 = sor.u32 256, 24
    %1955 = vbcast.lane.b32.xlu0 %v1941, %s1954
    %v1956 = vpop.permute.xlu0 %1955
    %s1958 = sor.u32 256, 32
    %1959 = vbcast.lane.b32.xlu0 %v1941, %s1958
    %v1960 = vpop.permute.xlu0 %1959
    %s1962 = sor.u32 256, 40
    %1963 = vbcast.lane.b32.xlu0 %v1941, %s1962
    %v1964 = vpop.permute.xlu0 %1963
    %s1966 = sor.u32 256, 48
    %1967 = vbcast.lane.b32.xlu0 %v1941, %s1966
    %v1968 = vpop.permute.xlu0 %1967
    %s1970 = sor.u32 256, 56
    %1971 = vbcast.lane.b32.xlu0 %v1941, %s1970
    %v1972 = vpop.permute.xlu0 %1971
    %s1974 = sor.u32 256, 64
    %1975 = vbcast.lane.b32.xlu0 %v1941, %s1974
    %v1976 = vpop.permute.xlu0 %1975
    %s1978 = sor.u32 256, 72
    %1979 = vbcast.lane.b32.xlu0 %v1941, %s1978
    %v1980 = vpop.permute.xlu0 %1979
    %s1982 = sor.u32 256, 80
    %1983 = vbcast.lane.b32.xlu0 %v1941, %s1982
    %v1984 = vpop.permute.xlu0 %1983
    %s1986 = sor.u32 256, 88
    %1987 = vbcast.lane.b32.xlu0 %v1941, %s1986
    %v1988 = vpop.permute.xlu0 %1987
    %s1990 = sor.u32 256, 96
    %1991 = vbcast.lane.b32.xlu0 %v1941, %s1990
    %v1992 = vpop.permute.xlu0 %1991
    %s1994 = sor.u32 256, 104
    %1995 = vbcast.lane.b32.xlu0 %v1941, %s1994
    %v1996 = vpop.permute.xlu0 %1995
    %s1998 = sor.u32 256, 112
    %1999 = vbcast.lane.b32.xlu0 %v1941, %s1998
    %v2000 = vpop.permute.xlu0 %1999
    %s2002 = sor.u32 256, 120
    %2003 = vbcast.lane.b32.xlu0 %v1941, %s2002
    %v2004 = vpop.permute.xlu0 %2003
    %v2053 = vmul.f32 %v1659, %v1810
    %v2054 = vmul.f32 %v1661, %v1814
    %v2055 = vmul.f32 %v1663, %v1818
    %v2056 = vmul.f32 %v1665, %v1822
    %v2057 = vmul.f32 %v1667, %v1826
    %v2058 = vmul.f32 %v1669, %v1830
    %v2059 = vmul.f32 %v1671, %v1834
    %v2060 = vmul.f32 %v1673, %v1838
    %v2061 = vmul.f32 %v1675, %v1842
    %v2062 = vmul.f32 %v1677, %v1846
    %v2063 = vmul.f32 %v1679, %v1850
    %v2064 = vmul.f32 %v1681, %v1854
    %v2065 = vmul.f32 %v1683, %v1858
    %v2066 = vmul.f32 %v1685, %v1862
    %v2067 = vmul.f32 %v1687, %v1866
    %v2068 = vmul.f32 %v1689, %v1870
    %v2069 = vmul.f32 %v1691, %v1877
    %v2070 = vmul.f32 %v1693, %v1881
    %v2071 = vmul.f32 %v1695, %v1885
    %v2072 = vmul.f32 %v1697, %v1889
    %v2073 = vmul.f32 %v1699, %v1893
    %v2074 = vmul.f32 %v1701, %v1897
    %v2075 = vmul.f32 %v1703, %v1901
    %v2076 = vmul.f32 %v1705, %v1905
    %v2077 = vmul.f32 %v1707, %v1909
    %v2078 = vmul.f32 %v1709, %v1913
    %v2079 = vmul.f32 %v1711, %v1917
    %v2080 = vmul.f32 %v1713, %v1921
    %v2081 = vmul.f32 %v1715, %v1925
    %v2082 = vmul.f32 %v1717, %v1929
    %v2083 = vmul.f32 %v1719, %v1933
    %v2084 = vmul.f32 %v1721, %v1937
    %v2085 = vmul.f32 %v1723, %v1944
    %v2086 = vmul.f32 %v1725, %v1948
    %v2087 = vmul.f32 %v1727, %v1952
    %v2088 = vmul.f32 %v1729, %v1956
    %v2089 = vmul.f32 %v1731, %v1960
    %v2090 = vmul.f32 %v1733, %v1964
    %v2091 = vmul.f32 %v1735, %v1968
    %v2092 = vmul.f32 %v1737, %v1972
    %v2093 = vmul.f32 %v1739, %v1976
    %v2094 = vmul.f32 %v1741, %v1980
    %v2095 = vmul.f32 %v1743, %v1984
    %v2096 = vmul.f32 %v1745, %v1988
    %v2097 = vmul.f32 %v1747, %v1992
    %v2098 = vmul.f32 %v1749, %v1996
    %v2099 = vmul.f32 %v1751, %v2000
    %v2100 = vmul.f32 %v1753, %v2004
    %v2101 = vsub.f32 %v1755, %v2053
    %v2102 = vsub.f32 %v1756, %v2054
    %v2103 = vsub.f32 %v1757, %v2055
    %v2104 = vsub.f32 %v1758, %v2056
    %v2105 = vsub.f32 %v1759, %v2057
    %v2106 = vsub.f32 %v1760, %v2058
    %v2107 = vsub.f32 %v1761, %v2059
    %v2108 = vsub.f32 %v1762, %v2060
    %v2109 = vsub.f32 %v1763, %v2061
    %v2110 = vsub.f32 %v1764, %v2062
    %v2111 = vsub.f32 %v1765, %v2063
    %v2112 = vsub.f32 %v1766, %v2064
    %v2113 = vsub.f32 %v1767, %v2065
    %v2114 = vsub.f32 %v1768, %v2066
    %v2115 = vsub.f32 %v1769, %v2067
    %v2116 = vsub.f32 %v1770, %v2068
    %v2117 = vsub.f32 %v1771, %v2069
    %v2118 = vsub.f32 %v1772, %v2070
    %v2119 = vsub.f32 %v1773, %v2071
    %v2120 = vsub.f32 %v1774, %v2072
    %v2121 = vsub.f32 %v1775, %v2073
    %v2122 = vsub.f32 %v1776, %v2074
    %v2123 = vsub.f32 %v1777, %v2075
    %v2124 = vsub.f32 %v1778, %v2076
    %v2125 = vsub.f32 %v1779, %v2077
    %v2126 = vsub.f32 %v1780, %v2078
    %v2127 = vsub.f32 %v1781, %v2079
    %v2128 = vsub.f32 %v1782, %v2080
    %v2129 = vsub.f32 %v1783, %v2081
    %v2130 = vsub.f32 %v1784, %v2082
    %v2131 = vsub.f32 %v1785, %v2083
    %v2132 = vsub.f32 %v1786, %v2084
    %v2133 = vsub.f32 %v1787, %v2085
    %v2134 = vsub.f32 %v1788, %v2086
    %v2135 = vsub.f32 %v1789, %v2087
    %v2136 = vsub.f32 %v1790, %v2088
    %v2137 = vsub.f32 %v1791, %v2089
    %v2138 = vsub.f32 %v1792, %v2090
    %v2139 = vsub.f32 %v1793, %v2091
    %v2140 = vsub.f32 %v1794, %v2092
    %v2141 = vsub.f32 %v1795, %v2093
    %v2142 = vsub.f32 %v1796, %v2094
    %v2143 = vsub.f32 %v1797, %v2095
    %v2144 = vsub.f32 %v1798, %v2096
    %v2145 = vsub.f32 %v1799, %v2097
    %v2146 = vsub.f32 %v1800, %v2098
    %v2147 = vsub.f32 %v1801, %v2099
    %v2148 = vsub.f32 %v1802, %v2100
    %v2149 = vand.u32 2147483647, %v1659
    %v2150 = vand.u32 2147483647, %v1661
    %v2151 = vand.u32 2147483647, %v1663
    %v2152 = vand.u32 2147483647, %v1665
    %v2153 = vand.u32 2147483647, %v1667
    %v2154 = vand.u32 2147483647, %v1669
    %v2155 = vand.u32 2147483647, %v1671
    %v2156 = vand.u32 2147483647, %v1673
    %v2157 = vand.u32 2147483647, %v1675
    %v2158 = vand.u32 2147483647, %v1677
    %v2159 = vand.u32 2147483647, %v1679
    %v2160 = vand.u32 2147483647, %v1681
    %v2161 = vand.u32 2147483647, %v1683
    %v2162 = vand.u32 2147483647, %v1685
    %v2163 = vand.u32 2147483647, %v1687
    %v2164 = vand.u32 2147483647, %v1689
    %v2165 = vand.u32 2147483647, %v1691
    %v2166 = vand.u32 2147483647, %v1693
    %v2167 = vand.u32 2147483647, %v1695
    %v2168 = vand.u32 2147483647, %v1697
    %v2169 = vand.u32 2147483647, %v1699
    %v2170 = vand.u32 2147483647, %v1701
    %v2171 = vand.u32 2147483647, %v1703
    %v2172 = vand.u32 2147483647, %v1705
    %v2173 = vand.u32 2147483647, %v1707
    %v2174 = vand.u32 2147483647, %v1709
    %v2175 = vand.u32 2147483647, %v1711
    %v2176 = vand.u32 2147483647, %v1713
    %v2177 = vand.u32 2147483647, %v1715
    %v2178 = vand.u32 2147483647, %v1717
    %v2179 = vand.u32 2147483647, %v1719
    %v2180 = vand.u32 2147483647, %v1721
    %v2181 = vand.u32 2147483647, %v1723
    %v2182 = vand.u32 2147483647, %v1725
    %v2183 = vand.u32 2147483647, %v1727
    %v2184 = vand.u32 2147483647, %v1729
    %v2185 = vand.u32 2147483647, %v1731
    %v2186 = vand.u32 2147483647, %v1733
    %v2187 = vand.u32 2147483647, %v1735
    %v2188 = vand.u32 2147483647, %v1737
    %v2189 = vand.u32 2147483647, %v1739
    %v2190 = vand.u32 2147483647, %v1741
    %v2191 = vand.u32 2147483647, %v1743
    %v2192 = vand.u32 2147483647, %v1745
    %v2193 = vand.u32 2147483647, %v1747
    %v2194 = vand.u32 2147483647, %v1749
    %v2195 = vand.u32 2147483647, %v1751
    %v2196 = vand.u32 2147483647, %v1753
    %v2197 = vsub.f32 0.0, %v2149
    %v2198 = vsub.f32 0.0, %v2150
    %v2199 = vsub.f32 0.0, %v2151
    %v2200 = vsub.f32 0.0, %v2152
    %v2201 = vsub.f32 0.0, %v2153
    %v2202 = vsub.f32 0.0, %v2154
    %v2203 = vsub.f32 0.0, %v2155
    %v2204 = vsub.f32 0.0, %v2156
    %v2205 = vsub.f32 0.0, %v2157
    %v2206 = vsub.f32 0.0, %v2158
    %v2207 = vsub.f32 0.0, %v2159
    %v2208 = vsub.f32 0.0, %v2160
    %v2209 = vsub.f32 0.0, %v2161
    %v2210 = vsub.f32 0.0, %v2162
    %v2211 = vsub.f32 0.0, %v2163
    %v2212 = vsub.f32 0.0, %v2164
    %v2213 = vsub.f32 0.0, %v2165
    %v2214 = vsub.f32 0.0, %v2166
    %v2215 = vsub.f32 0.0, %v2167
    %v2216 = vsub.f32 0.0, %v2168
    %v2217 = vsub.f32 0.0, %v2169
    %v2218 = vsub.f32 0.0, %v2170
    %v2219 = vsub.f32 0.0, %v2171
    %v2220 = vsub.f32 0.0, %v2172
    %v2221 = vsub.f32 0.0, %v2173
    %v2222 = vsub.f32 0.0, %v2174
    %v2223 = vsub.f32 0.0, %v2175
    %v2224 = vsub.f32 0.0, %v2176
    %v2225 = vsub.f32 0.0, %v2177
    %v2226 = vsub.f32 0.0, %v2178
    %v2227 = vsub.f32 0.0, %v2179
    %v2228 = vsub.f32 0.0, %v2180
    %v2229 = vsub.f32 0.0, %v2181
    %v2230 = vsub.f32 0.0, %v2182
    %v2231 = vsub.f32 0.0, %v2183
    %v2232 = vsub.f32 0.0, %v2184
    %v2233 = vsub.f32 0.0, %v2185
    %v2234 = vsub.f32 0.0, %v2186
    %v2235 = vsub.f32 0.0, %v2187
    %v2236 = vsub.f32 0.0, %v2188
    %v2237 = vsub.f32 0.0, %v2189
    %v2238 = vsub.f32 0.0, %v2190
    %v2239 = vsub.f32 0.0, %v2191
    %v2240 = vsub.f32 0.0, %v2192
    %v2241 = vsub.f32 0.0, %v2193
    %v2242 = vsub.f32 0.0, %v2194
    %v2243 = vsub.f32 0.0, %v2195
    %v2244 = vsub.f32 0.0, %v2196
    %v2245 = vmul.f32 %v2197, 1.442695
    %v2246 = vpow.pop %v2245
    %v2247 = vmul.f32 %v2198, 1.442695
    %v2248 = vpow.pop %v2247
    %v2249 = vmul.f32 %v2199, 1.442695
    %v2250 = vpow.pop %v2249
    %v2251 = vmul.f32 %v2200, 1.442695
    %v2252 = vpow.pop %v2251
    %v2253 = vmul.f32 %v2201, 1.442695
    %v2254 = vpow.pop %v2253
    %v2255 = vmul.f32 %v2202, 1.442695
    %v2256 = vpow.pop %v2255
    %v2257 = vmul.f32 %v2203, 1.442695
    %v2258 = vpow.pop %v2257
    %v2259 = vmul.f32 %v2204, 1.442695
    %v2260 = vpow.pop %v2259
    %v2261 = vmul.f32 %v2205, 1.442695
    %v2262 = vpow.pop %v2261
    %v2263 = vmul.f32 %v2206, 1.442695
    %v2264 = vpow.pop %v2263
    %v2265 = vmul.f32 %v2207, 1.442695
    %v2266 = vpow.pop %v2265
    %v2267 = vmul.f32 %v2208, 1.442695
    %v2268 = vpow.pop %v2267
    %v2269 = vmul.f32 %v2209, 1.442695
    %v2270 = vpow.pop %v2269
    %v2271 = vmul.f32 %v2210, 1.442695
    %v2272 = vpow.pop %v2271
    %v2273 = vmul.f32 %v2211, 1.442695
    %v2274 = vpow.pop %v2273
    %v2275 = vmul.f32 %v2212, 1.442695
    %v2276 = vpow.pop %v2275
    %v2277 = vmul.f32 %v2213, 1.442695
    %v2278 = vpow.pop %v2277
    %v2279 = vmul.f32 %v2214, 1.442695
    %v2280 = vpow.pop %v2279
    %v2281 = vmul.f32 %v2215, 1.442695
    %v2282 = vpow.pop %v2281
    %v2283 = vmul.f32 %v2216, 1.442695
    %v2284 = vpow.pop %v2283
    %v2285 = vmul.f32 %v2217, 1.442695
    %v2286 = vpow.pop %v2285
    %v2287 = vmul.f32 %v2218, 1.442695
    %v2288 = vpow.pop %v2287
    %v2289 = vmul.f32 %v2219, 1.442695
    %v2290 = vpow.pop %v2289
    %v2291 = vmul.f32 %v2220, 1.442695
    %v2292 = vpow.pop %v2291
    %v2293 = vmul.f32 %v2221, 1.442695
    %v2294 = vpow.pop %v2293
    %v2295 = vmul.f32 %v2222, 1.442695
    %v2296 = vpow.pop %v2295
    %v2297 = vmul.f32 %v2223, 1.442695
    %v2298 = vpow.pop %v2297
    %v2299 = vmul.f32 %v2224, 1.442695
    %v2300 = vpow.pop %v2299
    %v2301 = vmul.f32 %v2225, 1.442695
    %v2302 = vpow.pop %v2301
    %v2303 = vmul.f32 %v2226, 1.442695
    %v2304 = vpow.pop %v2303
    %v2305 = vmul.f32 %v2227, 1.442695
    %v2306 = vpow.pop %v2305
    %v2307 = vmul.f32 %v2228, 1.442695
    %v2308 = vpow.pop %v2307
    %v2309 = vmul.f32 %v2229, 1.442695
    %v2310 = vpow.pop %v2309
    %v2311 = vmul.f32 %v2230, 1.442695
    %v2312 = vpow.pop %v2311
    %v2313 = vmul.f32 %v2231, 1.442695
    %v2314 = vpow.pop %v2313
    %v2315 = vmul.f32 %v2232, 1.442695
    %v2316 = vpow.pop %v2315
    %v2317 = vmul.f32 %v2233, 1.442695
    %v2318 = vpow.pop %v2317
    %v2319 = vmul.f32 %v2234, 1.442695
    %v2320 = vpow.pop %v2319
    %v2321 = vmul.f32 %v2235, 1.442695
    %v2322 = vpow.pop %v2321
    %v2323 = vmul.f32 %v2236, 1.442695
    %v2324 = vpow.pop %v2323
    %v2325 = vmul.f32 %v2237, 1.442695
    %v2326 = vpow.pop %v2325
    %v2327 = vmul.f32 %v2238, 1.442695
    %v2328 = vpow.pop %v2327
    %v2329 = vmul.f32 %v2239, 1.442695
    %v2330 = vpow.pop %v2329
    %v2331 = vmul.f32 %v2240, 1.442695
    %v2332 = vpow.pop %v2331
    %v2333 = vmul.f32 %v2241, 1.442695
    %v2334 = vpow.pop %v2333
    %v2335 = vmul.f32 %v2242, 1.442695
    %v2336 = vpow.pop %v2335
    %v2337 = vmul.f32 %v2243, 1.442695
    %v2338 = vpow.pop %v2337
    %v2339 = vmul.f32 %v2244, 1.442695
    %v2340 = vpow.pop %v2339
    %v2341 = vadd.f32 %v2246, 1.0
    %v2342 = vlog2.pop %v2341
    %v2343 = vmul.f32 %v2342, 0.6931472
    %v2344 = vmul.f32 -0.5, %v2246
    %v2345 = vadd.f32 %v2344, 1.0
    %v2346 = vmul.f32 %v2345, %v2246
    %v2347 = vand.u32 2147483647, %v2246
    %vm2348 = vcmp.lt.f32.partialorder %v2347, 0.0004427343
    %v2349 = vsel %vm2348, %v2346, %v2343
    %v2350 = vadd.f32 %v2248, 1.0
    %v2351 = vlog2.pop %v2350
    %v2352 = vmul.f32 %v2351, 0.6931472
    %v2353 = vmul.f32 -0.5, %v2248
    %v2354 = vadd.f32 %v2353, 1.0
    %v2355 = vmul.f32 %v2354, %v2248
    %v2356 = vand.u32 2147483647, %v2248
    %vm2357 = vcmp.lt.f32.partialorder %v2356, 0.0004427343
    %v2358 = vsel %vm2357, %v2355, %v2352
    %v2359 = vadd.f32 %v2250, 1.0
    %v2360 = vlog2.pop %v2359
    %v2361 = vmul.f32 %v2360, 0.6931472
    %v2362 = vmul.f32 -0.5, %v2250
    %v2363 = vadd.f32 %v2362, 1.0
    %v2364 = vmul.f32 %v2363, %v2250
    %v2365 = vand.u32 2147483647, %v2250
    %vm2366 = vcmp.lt.f32.partialorder %v2365, 0.0004427343
    %v2367 = vsel %vm2366, %v2364, %v2361
    %v2368 = vadd.f32 %v2252, 1.0
    %v2369 = vlog2.pop %v2368
    %v2370 = vmul.f32 %v2369, 0.6931472
    %v2371 = vmul.f32 -0.5, %v2252
    %v2372 = vadd.f32 %v2371, 1.0
    %v2373 = vmul.f32 %v2372, %v2252
    %v2374 = vand.u32 2147483647, %v2252
    %vm2375 = vcmp.lt.f32.partialorder %v2374, 0.0004427343
    %v2376 = vsel %vm2375, %v2373, %v2370
    %v2377 = vadd.f32 %v2254, 1.0
    %v2378 = vlog2.pop %v2377
    %v2379 = vmul.f32 %v2378, 0.6931472
    %v2380 = vmul.f32 -0.5, %v2254
    %v2381 = vadd.f32 %v2380, 1.0
    %v2382 = vmul.f32 %v2381, %v2254
    %v2383 = vand.u32 2147483647, %v2254
    %vm2384 = vcmp.lt.f32.partialorder %v2383, 0.0004427343
    %v2385 = vsel %vm2384, %v2382, %v2379
    %v2386 = vadd.f32 %v2256, 1.0
    %v2387 = vlog2.pop %v2386
    %v2388 = vmul.f32 %v2387, 0.6931472
    %v2389 = vmul.f32 -0.5, %v2256
    %v2390 = vadd.f32 %v2389, 1.0
    %v2391 = vmul.f32 %v2390, %v2256
    %v2392 = vand.u32 2147483647, %v2256
    %vm2393 = vcmp.lt.f32.partialorder %v2392, 0.0004427343
    %v2394 = vsel %vm2393, %v2391, %v2388
    %v2395 = vadd.f32 %v2258, 1.0
    %v2396 = vlog2.pop %v2395
    %v2397 = vmul.f32 %v2396, 0.6931472
    %v2398 = vmul.f32 -0.5, %v2258
    %v2399 = vadd.f32 %v2398, 1.0
    %v2400 = vmul.f32 %v2399, %v2258
    %v2401 = vand.u32 2147483647, %v2258
    %vm2402 = vcmp.lt.f32.partialorder %v2401, 0.0004427343
    %v2403 = vsel %vm2402, %v2400, %v2397
    %v2404 = vadd.f32 %v2260, 1.0
    %v2405 = vlog2.pop %v2404
    %v2406 = vmul.f32 %v2405, 0.6931472
    %v2407 = vmul.f32 -0.5, %v2260
    %v2408 = vadd.f32 %v2407, 1.0
    %v2409 = vmul.f32 %v2408, %v2260
    %v2410 = vand.u32 2147483647, %v2260
    %vm2411 = vcmp.lt.f32.partialorder %v2410, 0.0004427343
    %v2412 = vsel %vm2411, %v2409, %v2406
    %v2413 = vadd.f32 %v2262, 1.0
    %v2414 = vlog2.pop %v2413
    %v2415 = vmul.f32 %v2414, 0.6931472
    %v2416 = vmul.f32 -0.5, %v2262
    %v2417 = vadd.f32 %v2416, 1.0
    %v2418 = vmul.f32 %v2417, %v2262
    %v2419 = vand.u32 2147483647, %v2262
    %vm2420 = vcmp.lt.f32.partialorder %v2419, 0.0004427343
    %v2421 = vsel %vm2420, %v2418, %v2415
    %v2422 = vadd.f32 %v2264, 1.0
    %v2423 = vlog2.pop %v2422
    %v2424 = vmul.f32 %v2423, 0.6931472
    %v2425 = vmul.f32 -0.5, %v2264
    %v2426 = vadd.f32 %v2425, 1.0
    %v2427 = vmul.f32 %v2426, %v2264
    %v2428 = vand.u32 2147483647, %v2264
    %vm2429 = vcmp.lt.f32.partialorder %v2428, 0.0004427343
    %v2430 = vsel %vm2429, %v2427, %v2424
    %v2431 = vadd.f32 %v2266, 1.0
    %v2432 = vlog2.pop %v2431
    %v2433 = vmul.f32 %v2432, 0.6931472
    %v2434 = vmul.f32 -0.5, %v2266
    %v2435 = vadd.f32 %v2434, 1.0
    %v2436 = vmul.f32 %v2435, %v2266
    %v2437 = vand.u32 2147483647, %v2266
    %vm2438 = vcmp.lt.f32.partialorder %v2437, 0.0004427343
    %v2439 = vsel %vm2438, %v2436, %v2433
    %v2440 = vadd.f32 %v2268, 1.0
    %v2441 = vlog2.pop %v2440
    %v2442 = vmul.f32 %v2441, 0.6931472
    %v2443 = vmul.f32 -0.5, %v2268
    %v2444 = vadd.f32 %v2443, 1.0
    %v2445 = vmul.f32 %v2444, %v2268
    %v2446 = vand.u32 2147483647, %v2268
    %vm2447 = vcmp.lt.f32.partialorder %v2446, 0.0004427343
    %v2448 = vsel %vm2447, %v2445, %v2442
    %v2449 = vadd.f32 %v2270, 1.0
    %v2450 = vlog2.pop %v2449
    %v2451 = vmul.f32 %v2450, 0.6931472
    %v2452 = vmul.f32 -0.5, %v2270
    %v2453 = vadd.f32 %v2452, 1.0
    %v2454 = vmul.f32 %v2453, %v2270
    %v2455 = vand.u32 2147483647, %v2270
    %vm2456 = vcmp.lt.f32.partialorder %v2455, 0.0004427343
    %v2457 = vsel %vm2456, %v2454, %v2451
    %v2458 = vadd.f32 %v2272, 1.0
    %v2459 = vlog2.pop %v2458
    %v2460 = vmul.f32 %v2459, 0.6931472
    %v2461 = vmul.f32 -0.5, %v2272
    %v2462 = vadd.f32 %v2461, 1.0
    %v2463 = vmul.f32 %v2462, %v2272
    %v2464 = vand.u32 2147483647, %v2272
    %vm2465 = vcmp.lt.f32.partialorder %v2464, 0.0004427343
    %v2466 = vsel %vm2465, %v2463, %v2460
    %v2467 = vadd.f32 %v2274, 1.0
    %v2468 = vlog2.pop %v2467
    %v2469 = vmul.f32 %v2468, 0.6931472
    %v2470 = vmul.f32 -0.5, %v2274
    %v2471 = vadd.f32 %v2470, 1.0
    %v2472 = vmul.f32 %v2471, %v2274
    %v2473 = vand.u32 2147483647, %v2274
    %vm2474 = vcmp.lt.f32.partialorder %v2473, 0.0004427343
    %v2475 = vsel %vm2474, %v2472, %v2469
    %v2476 = vadd.f32 %v2276, 1.0
    %v2477 = vlog2.pop %v2476
    %v2478 = vmul.f32 %v2477, 0.6931472
    %v2479 = vmul.f32 -0.5, %v2276
    %v2480 = vadd.f32 %v2479, 1.0
    %v2481 = vmul.f32 %v2480, %v2276
    %v2482 = vand.u32 2147483647, %v2276
    %vm2483 = vcmp.lt.f32.partialorder %v2482, 0.0004427343
    %v2484 = vsel %vm2483, %v2481, %v2478
    %v2485 = vadd.f32 %v2278, 1.0
    %v2486 = vlog2.pop %v2485
    %v2487 = vmul.f32 %v2486, 0.6931472
    %v2488 = vmul.f32 -0.5, %v2278
    %v2489 = vadd.f32 %v2488, 1.0
    %v2490 = vmul.f32 %v2489, %v2278
    %v2491 = vand.u32 2147483647, %v2278
    %vm2492 = vcmp.lt.f32.partialorder %v2491, 0.0004427343
    %v2493 = vsel %vm2492, %v2490, %v2487
    %v2494 = vadd.f32 %v2280, 1.0
    %v2495 = vlog2.pop %v2494
    %v2496 = vmul.f32 %v2495, 0.6931472
    %v2497 = vmul.f32 -0.5, %v2280
    %v2498 = vadd.f32 %v2497, 1.0
    %v2499 = vmul.f32 %v2498, %v2280
    %v2500 = vand.u32 2147483647, %v2280
    %vm2501 = vcmp.lt.f32.partialorder %v2500, 0.0004427343
    %v2502 = vsel %vm2501, %v2499, %v2496
    %v2503 = vadd.f32 %v2282, 1.0
    %v2504 = vlog2.pop %v2503
    %v2505 = vmul.f32 %v2504, 0.6931472
    %v2506 = vmul.f32 -0.5, %v2282
    %v2507 = vadd.f32 %v2506, 1.0
    %v2508 = vmul.f32 %v2507, %v2282
    %v2509 = vand.u32 2147483647, %v2282
    %vm2510 = vcmp.lt.f32.partialorder %v2509, 0.0004427343
    %v2511 = vsel %vm2510, %v2508, %v2505
    %v2512 = vadd.f32 %v2284, 1.0
    %v2513 = vlog2.pop %v2512
    %v2514 = vmul.f32 %v2513, 0.6931472
    %v2515 = vmul.f32 -0.5, %v2284
    %v2516 = vadd.f32 %v2515, 1.0
    %v2517 = vmul.f32 %v2516, %v2284
    %v2518 = vand.u32 2147483647, %v2284
    %vm2519 = vcmp.lt.f32.partialorder %v2518, 0.0004427343
    %v2520 = vsel %vm2519, %v2517, %v2514
    %v2521 = vadd.f32 %v2286, 1.0
    %v2522 = vlog2.pop %v2521
    %v2523 = vmul.f32 %v2522, 0.6931472
    %v2524 = vmul.f32 -0.5, %v2286
    %v2525 = vadd.f32 %v2524, 1.0
    %v2526 = vmul.f32 %v2525, %v2286
    %v2527 = vand.u32 2147483647, %v2286
    %vm2528 = vcmp.lt.f32.partialorder %v2527, 0.0004427343
    %v2529 = vsel %vm2528, %v2526, %v2523
    %v2530 = vadd.f32 %v2288, 1.0
    %v2531 = vlog2.pop %v2530
    %v2532 = vmul.f32 %v2531, 0.6931472
    %v2533 = vmul.f32 -0.5, %v2288
    %v2534 = vadd.f32 %v2533, 1.0
    %v2535 = vmul.f32 %v2534, %v2288
    %v2536 = vand.u32 2147483647, %v2288
    %vm2537 = vcmp.lt.f32.partialorder %v2536, 0.0004427343
    %v2538 = vsel %vm2537, %v2535, %v2532
    %v2539 = vadd.f32 %v2290, 1.0
    %v2540 = vlog2.pop %v2539
    %v2541 = vmul.f32 %v2540, 0.6931472
    %v2542 = vmul.f32 -0.5, %v2290
    %v2543 = vadd.f32 %v2542, 1.0
    %v2544 = vmul.f32 %v2543, %v2290
    %v2545 = vand.u32 2147483647, %v2290
    %vm2546 = vcmp.lt.f32.partialorder %v2545, 0.0004427343
    %v2547 = vsel %vm2546, %v2544, %v2541
    %v2548 = vadd.f32 %v2292, 1.0
    %v2549 = vlog2.pop %v2548
    %v2550 = vmul.f32 %v2549, 0.6931472
    %v2551 = vmul.f32 -0.5, %v2292
    %v2552 = vadd.f32 %v2551, 1.0
    %v2553 = vmul.f32 %v2552, %v2292
    %v2554 = vand.u32 2147483647, %v2292
    %vm2555 = vcmp.lt.f32.partialorder %v2554, 0.0004427343
    %v2556 = vsel %vm2555, %v2553, %v2550
    %v2557 = vadd.f32 %v2294, 1.0
    %v2558 = vlog2.pop %v2557
    %v2559 = vmul.f32 %v2558, 0.6931472
    %v2560 = vmul.f32 -0.5, %v2294
    %v2561 = vadd.f32 %v2560, 1.0
    %v2562 = vmul.f32 %v2561, %v2294
    %v2563 = vand.u32 2147483647, %v2294
    %vm2564 = vcmp.lt.f32.partialorder %v2563, 0.0004427343
    %v2565 = vsel %vm2564, %v2562, %v2559
    %v2566 = vadd.f32 %v2296, 1.0
    %v2567 = vlog2.pop %v2566
    %v2568 = vmul.f32 %v2567, 0.6931472
    %v2569 = vmul.f32 -0.5, %v2296
    %v2570 = vadd.f32 %v2569, 1.0
    %v2571 = vmul.f32 %v2570, %v2296
    %v2572 = vand.u32 2147483647, %v2296
    %vm2573 = vcmp.lt.f32.partialorder %v2572, 0.0004427343
    %v2574 = vsel %vm2573, %v2571, %v2568
    %v2575 = vadd.f32 %v2298, 1.0
    %v2576 = vlog2.pop %v2575
    %v2577 = vmul.f32 %v2576, 0.6931472
    %v2578 = vmul.f32 -0.5, %v2298
    %v2579 = vadd.f32 %v2578, 1.0
    %v2580 = vmul.f32 %v2579, %v2298
    %v2581 = vand.u32 2147483647, %v2298
    %vm2582 = vcmp.lt.f32.partialorder %v2581, 0.0004427343
    %v2583 = vsel %vm2582, %v2580, %v2577
    %v2584 = vadd.f32 %v2300, 1.0
    %v2585 = vlog2.pop %v2584
    %v2586 = vmul.f32 %v2585, 0.6931472
    %v2587 = vmul.f32 -0.5, %v2300
    %v2588 = vadd.f32 %v2587, 1.0
    %v2589 = vmul.f32 %v2588, %v2300
    %v2590 = vand.u32 2147483647, %v2300
    %vm2591 = vcmp.lt.f32.partialorder %v2590, 0.0004427343
    %v2592 = vsel %vm2591, %v2589, %v2586
    %v2593 = vadd.f32 %v2302, 1.0
    %v2594 = vlog2.pop %v2593
    %v2595 = vmul.f32 %v2594, 0.6931472
    %v2596 = vmul.f32 -0.5, %v2302
    %v2597 = vadd.f32 %v2596, 1.0
    %v2598 = vmul.f32 %v2597, %v2302
    %v2599 = vand.u32 2147483647, %v2302
    %vm2600 = vcmp.lt.f32.partialorder %v2599, 0.0004427343
    %v2601 = vsel %vm2600, %v2598, %v2595
    %v2602 = vadd.f32 %v2304, 1.0
    %v2603 = vlog2.pop %v2602
    %v2604 = vmul.f32 %v2603, 0.6931472
    %v2605 = vmul.f32 -0.5, %v2304
    %v2606 = vadd.f32 %v2605, 1.0
    %v2607 = vmul.f32 %v2606, %v2304
    %v2608 = vand.u32 2147483647, %v2304
    %vm2609 = vcmp.lt.f32.partialorder %v2608, 0.0004427343
    %v2610 = vsel %vm2609, %v2607, %v2604
    %v2611 = vadd.f32 %v2306, 1.0
    %v2612 = vlog2.pop %v2611
    %v2613 = vmul.f32 %v2612, 0.6931472
    %v2614 = vmul.f32 -0.5, %v2306
    %v2615 = vadd.f32 %v2614, 1.0
    %v2616 = vmul.f32 %v2615, %v2306
    %v2617 = vand.u32 2147483647, %v2306
    %vm2618 = vcmp.lt.f32.partialorder %v2617, 0.0004427343
    %v2619 = vsel %vm2618, %v2616, %v2613
    %v2620 = vadd.f32 %v2308, 1.0
    %v2621 = vlog2.pop %v2620
    %v2622 = vmul.f32 %v2621, 0.6931472
    %v2623 = vmul.f32 -0.5, %v2308
    %v2624 = vadd.f32 %v2623, 1.0
    %v2625 = vmul.f32 %v2624, %v2308
    %v2626 = vand.u32 2147483647, %v2308
    %vm2627 = vcmp.lt.f32.partialorder %v2626, 0.0004427343
    %v2628 = vsel %vm2627, %v2625, %v2622
    %v2629 = vadd.f32 %v2310, 1.0
    %v2630 = vlog2.pop %v2629
    %v2631 = vmul.f32 %v2630, 0.6931472
    %v2632 = vmul.f32 -0.5, %v2310
    %v2633 = vadd.f32 %v2632, 1.0
    %v2634 = vmul.f32 %v2633, %v2310
    %v2635 = vand.u32 2147483647, %v2310
    %vm2636 = vcmp.lt.f32.partialorder %v2635, 0.0004427343
    %v2637 = vsel %vm2636, %v2634, %v2631
    %v2638 = vadd.f32 %v2312, 1.0
    %v2639 = vlog2.pop %v2638
    %v2640 = vmul.f32 %v2639, 0.6931472
    %v2641 = vmul.f32 -0.5, %v2312
    %v2642 = vadd.f32 %v2641, 1.0
    %v2643 = vmul.f32 %v2642, %v2312
    %v2644 = vand.u32 2147483647, %v2312
    %vm2645 = vcmp.lt.f32.partialorder %v2644, 0.0004427343
    %v2646 = vsel %vm2645, %v2643, %v2640
    %v2647 = vadd.f32 %v2314, 1.0
    %v2648 = vlog2.pop %v2647
    %v2649 = vmul.f32 %v2648, 0.6931472
    %v2650 = vmul.f32 -0.5, %v2314
    %v2651 = vadd.f32 %v2650, 1.0
    %v2652 = vmul.f32 %v2651, %v2314
    %v2653 = vand.u32 2147483647, %v2314
    %vm2654 = vcmp.lt.f32.partialorder %v2653, 0.0004427343
    %v2655 = vsel %vm2654, %v2652, %v2649
    %v2656 = vadd.f32 %v2316, 1.0
    %v2657 = vlog2.pop %v2656
    %v2658 = vmul.f32 %v2657, 0.6931472
    %v2659 = vmul.f32 -0.5, %v2316
    %v2660 = vadd.f32 %v2659, 1.0
    %v2661 = vmul.f32 %v2660, %v2316
    %v2662 = vand.u32 2147483647, %v2316
    %vm2663 = vcmp.lt.f32.partialorder %v2662, 0.0004427343
    %v2664 = vsel %vm2663, %v2661, %v2658
    %v2665 = vadd.f32 %v2318, 1.0
    %v2666 = vlog2.pop %v2665
    %v2667 = vmul.f32 %v2666, 0.6931472
    %v2668 = vmul.f32 -0.5, %v2318
    %v2669 = vadd.f32 %v2668, 1.0
    %v2670 = vmul.f32 %v2669, %v2318
    %v2671 = vand.u32 2147483647, %v2318
    %vm2672 = vcmp.lt.f32.partialorder %v2671, 0.0004427343
    %v2673 = vsel %vm2672, %v2670, %v2667
    %v2674 = vadd.f32 %v2320, 1.0
    %v2675 = vlog2.pop %v2674
    %v2676 = vmul.f32 %v2675, 0.6931472
    %v2677 = vmul.f32 -0.5, %v2320
    %v2678 = vadd.f32 %v2677, 1.0
    %v2679 = vmul.f32 %v2678, %v2320
    %v2680 = vand.u32 2147483647, %v2320
    %vm2681 = vcmp.lt.f32.partialorder %v2680, 0.0004427343
    %v2682 = vsel %vm2681, %v2679, %v2676
    %v2683 = vadd.f32 %v2322, 1.0
    %v2684 = vlog2.pop %v2683
    %v2685 = vmul.f32 %v2684, 0.6931472
    %v2686 = vmul.f32 -0.5, %v2322
    %v2687 = vadd.f32 %v2686, 1.0
    %v2688 = vmul.f32 %v2687, %v2322
    %v2689 = vand.u32 2147483647, %v2322
    %vm2690 = vcmp.lt.f32.partialorder %v2689, 0.0004427343
    %v2691 = vsel %vm2690, %v2688, %v2685
    %v2692 = vadd.f32 %v2324, 1.0
    %v2693 = vlog2.pop %v2692
    %v2694 = vmul.f32 %v2693, 0.6931472
    %v2695 = vmul.f32 -0.5, %v2324
    %v2696 = vadd.f32 %v2695, 1.0
    %v2697 = vmul.f32 %v2696, %v2324
    %v2698 = vand.u32 2147483647, %v2324
    %vm2699 = vcmp.lt.f32.partialorder %v2698, 0.0004427343
    %v2700 = vsel %vm2699, %v2697, %v2694
    %v2701 = vadd.f32 %v2326, 1.0
    %v2702 = vlog2.pop %v2701
    %v2703 = vmul.f32 %v2702, 0.6931472
    %v2704 = vmul.f32 -0.5, %v2326
    %v2705 = vadd.f32 %v2704, 1.0
    %v2706 = vmul.f32 %v2705, %v2326
    %v2707 = vand.u32 2147483647, %v2326
    %vm2708 = vcmp.lt.f32.partialorder %v2707, 0.0004427343
    %v2709 = vsel %vm2708, %v2706, %v2703
    %v2710 = vadd.f32 %v2328, 1.0
    %v2711 = vlog2.pop %v2710
    %v2712 = vmul.f32 %v2711, 0.6931472
    %v2713 = vmul.f32 -0.5, %v2328
    %v2714 = vadd.f32 %v2713, 1.0
    %v2715 = vmul.f32 %v2714, %v2328
    %v2716 = vand.u32 2147483647, %v2328
    %vm2717 = vcmp.lt.f32.partialorder %v2716, 0.0004427343
    %v2718 = vsel %vm2717, %v2715, %v2712
    %v2719 = vadd.f32 %v2330, 1.0
    %v2720 = vlog2.pop %v2719
    %v2721 = vmul.f32 %v2720, 0.6931472
    %v2722 = vmul.f32 -0.5, %v2330
    %v2723 = vadd.f32 %v2722, 1.0
    %v2724 = vmul.f32 %v2723, %v2330
    %v2725 = vand.u32 2147483647, %v2330
    %vm2726 = vcmp.lt.f32.partialorder %v2725, 0.0004427343
    %v2727 = vsel %vm2726, %v2724, %v2721
    %v2728 = vadd.f32 %v2332, 1.0
    %v2729 = vlog2.pop %v2728
    %v2730 = vmul.f32 %v2729, 0.6931472
    %v2731 = vmul.f32 -0.5, %v2332
    %v2732 = vadd.f32 %v2731, 1.0
    %v2733 = vmul.f32 %v2732, %v2332
    %v2734 = vand.u32 2147483647, %v2332
    %vm2735 = vcmp.lt.f32.partialorder %v2734, 0.0004427343
    %v2736 = vsel %vm2735, %v2733, %v2730
    %v2737 = vadd.f32 %v2334, 1.0
    %v2738 = vlog2.pop %v2737
    %v2739 = vmul.f32 %v2738, 0.6931472
    %v2740 = vmul.f32 -0.5, %v2334
    %v2741 = vadd.f32 %v2740, 1.0
    %v2742 = vmul.f32 %v2741, %v2334
    %v2743 = vand.u32 2147483647, %v2334
    %vm2744 = vcmp.lt.f32.partialorder %v2743, 0.0004427343
    %v2745 = vsel %vm2744, %v2742, %v2739
    %v2746 = vadd.f32 %v2336, 1.0
    %v2747 = vlog2.pop %v2746
    %v2748 = vmul.f32 %v2747, 0.6931472
    %v2749 = vmul.f32 -0.5, %v2336
    %v2750 = vadd.f32 %v2749, 1.0
    %v2751 = vmul.f32 %v2750, %v2336
    %v2752 = vand.u32 2147483647, %v2336
    %vm2753 = vcmp.lt.f32.partialorder %v2752, 0.0004427343
    %v2754 = vsel %vm2753, %v2751, %v2748
    %v2755 = vadd.f32 %v2338, 1.0
    %v2756 = vlog2.pop %v2755
    %v2757 = vmul.f32 %v2756, 0.6931472
    %v2758 = vmul.f32 -0.5, %v2338
    %v2759 = vadd.f32 %v2758, 1.0
    %v2760 = vmul.f32 %v2759, %v2338
    %v2761 = vand.u32 2147483647, %v2338
    %vm2762 = vcmp.lt.f32.partialorder %v2761, 0.0004427343
    %v2763 = vsel %vm2762, %v2760, %v2757
    %v2764 = vadd.f32 %v2340, 1.0
    %v2765 = vlog2.pop %v2764
    %v2766 = vmul.f32 %v2765, 0.6931472
    %v2767 = vmul.f32 -0.5, %v2340
    %v2768 = vadd.f32 %v2767, 1.0
    %v2769 = vmul.f32 %v2768, %v2340
    %v2770 = vand.u32 2147483647, %v2340
    %vm2771 = vcmp.lt.f32.partialorder %v2770, 0.0004427343
    %v2772 = vsel %vm2771, %v2769, %v2766
    %v2773 = vadd.f32 %v2101, %v2349
    %v2774 = vadd.f32 %v2102, %v2358
    %v2775 = vadd.f32 %v2103, %v2367
    %v2776 = vadd.f32 %v2104, %v2376
    %v2777 = vadd.f32 %v2105, %v2385
    %v2778 = vadd.f32 %v2106, %v2394
    %v2779 = vadd.f32 %v2107, %v2403
    %v2780 = vadd.f32 %v2108, %v2412
    %v2781 = vadd.f32 %v2109, %v2421
    %v2782 = vadd.f32 %v2110, %v2430
    %v2783 = vadd.f32 %v2111, %v2439
    %v2784 = vadd.f32 %v2112, %v2448
    %v2785 = vadd.f32 %v2113, %v2457
    %v2786 = vadd.f32 %v2114, %v2466
    %v2787 = vadd.f32 %v2115, %v2475
    %v2788 = vadd.f32 %v2116, %v2484
    %v2789 = vadd.f32 %v2117, %v2493
    %v2790 = vadd.f32 %v2118, %v2502
    %v2791 = vadd.f32 %v2119, %v2511
    %v2792 = vadd.f32 %v2120, %v2520
    %v2793 = vadd.f32 %v2121, %v2529
    %v2794 = vadd.f32 %v2122, %v2538
    %v2795 = vadd.f32 %v2123, %v2547
    %v2796 = vadd.f32 %v2124, %v2556
    %v2797 = vadd.f32 %v2125, %v2565
    %v2798 = vadd.f32 %v2126, %v2574
    %v2799 = vadd.f32 %v2127, %v2583
    %v2800 = vadd.f32 %v2128, %v2592
    %v2801 = vadd.f32 %v2129, %v2601
    %v2802 = vadd.f32 %v2130, %v2610
    %v2803 = vadd.f32 %v2131, %v2619
    %v2804 = vadd.f32 %v2132, %v2628
    %v2805 = vadd.f32 %v2133, %v2637
    %v2806 = vadd.f32 %v2134, %v2646
    %v2807 = vadd.f32 %v2135, %v2655
    %v2808 = vadd.f32 %v2136, %v2664
    %v2809 = vadd.f32 %v2137, %v2673
    %v2810 = vadd.f32 %v2138, %v2682
    %v2811 = vadd.f32 %v2139, %v2691
    %v2812 = vadd.f32 %v2140, %v2700
    %v2813 = vadd.f32 %v2141, %v2709
    %v2814 = vadd.f32 %v2142, %v2718
    %v2815 = vadd.f32 %v2143, %v2727
    %v2816 = vadd.f32 %v2144, %v2736
    %v2817 = vadd.f32 %v2145, %v2745
    %v2818 = vadd.f32 %v2146, %v2754
    %v2819 = vadd.f32 %v2147, %v2763
    %v2820 = vadd.f32 %v2148, %v2772
    %v2821 = vlaneseq
    %v2822 = vshrl.u32 %v2821, 7
    %s2823 = smul.u32 0, 384
    %v2824 = vmul.u32 %v2822, 128
    %v2825 = vstv %s2823
    %v2826 = vadd.s32 %v2825, %v2824
    %v2827 = vadd.s32 %v2826, %v22
    %vm2828 = vcmp.lt.s32.totalorder %v2827, 300
    %2877 = vset.pattern.permute.xlu0 0
    %2878 = vperm.xlu0 %2877, %v2773
    %v2879 = vpop.permute.xlu0 %2878
    %2880 = vset.pattern.permute.xlu0 0
    %2881 = vperm.xlu0 %2880, %v2774
    %v2882 = vpop.permute.xlu0 %2881
    %2883 = vset.pattern.permute.xlu0 0
    %2884 = vperm.xlu0 %2883, %v2775
    %v2885 = vpop.permute.xlu0 %2884
    %2886 = vset.pattern.permute.xlu0 0
    %2887 = vperm.xlu0 %2886, %v2776
    %v2888 = vpop.permute.xlu0 %2887
    %2889 = vset.pattern.permute.xlu0 0
    %2890 = vperm.xlu0 %2889, %v2777
    %v2891 = vpop.permute.xlu0 %2890
    %2892 = vset.pattern.permute.xlu0 0
    %2893 = vperm.xlu0 %2892, %v2778
    %v2894 = vpop.permute.xlu0 %2893
    %2895 = vset.pattern.permute.xlu0 0
    %2896 = vperm.xlu0 %2895, %v2779
    %v2897 = vpop.permute.xlu0 %2896
    %2898 = vset.pattern.permute.xlu0 0
    %2899 = vperm.xlu0 %2898, %v2780
    %v2900 = vpop.permute.xlu0 %2899
    %2901 = vset.pattern.permute.xlu0 0
    %2902 = vperm.xlu0 %2901, %v2781
    %v2903 = vpop.permute.xlu0 %2902
    %2904 = vset.pattern.permute.xlu0 0
    %2905 = vperm.xlu0 %2904, %v2782
    %v2906 = vpop.permute.xlu0 %2905
    %2907 = vset.pattern.permute.xlu0 0
    %2908 = vperm.xlu0 %2907, %v2783
    %v2909 = vpop.permute.xlu0 %2908
    %2910 = vset.pattern.permute.xlu0 0
    %2911 = vperm.xlu0 %2910, %v2784
    %v2912 = vpop.permute.xlu0 %2911
    %2913 = vset.pattern.permute.xlu0 0
    %2914 = vperm.xlu0 %2913, %v2785
    %v2915 = vpop.permute.xlu0 %2914
    %2916 = vset.pattern.permute.xlu0 0
    %2917 = vperm.xlu0 %2916, %v2786
    %v2918 = vpop.permute.xlu0 %2917
    %2919 = vset.pattern.permute.xlu0 0
    %2920 = vperm.xlu0 %2919, %v2787
    %v2921 = vpop.permute.xlu0 %2920
    %2922 = vset.pattern.permute.xlu0 0
    %2923 = vperm.xlu0 %2922, %v2788
    %v2924 = vpop.permute.xlu0 %2923
    %2925 = vset.pattern.permute.xlu0 0
    %2926 = vperm.xlu0 %2925, %v2789
    %v2927 = vpop.permute.xlu0 %2926
    %2928 = vset.pattern.permute.xlu0 0
    %2929 = vperm.xlu0 %2928, %v2790
    %v2930 = vpop.permute.xlu0 %2929
    %2931 = vset.pattern.permute.xlu0 0
    %2932 = vperm.xlu0 %2931, %v2791
    %v2933 = vpop.permute.xlu0 %2932
    %2934 = vset.pattern.permute.xlu0 0
    %2935 = vperm.xlu0 %2934, %v2792
    %v2936 = vpop.permute.xlu0 %2935
    %2937 = vset.pattern.permute.xlu0 0
    %2938 = vperm.xlu0 %2937, %v2793
    %v2939 = vpop.permute.xlu0 %2938
    %2940 = vset.pattern.permute.xlu0 0
    %2941 = vperm.xlu0 %2940, %v2794
    %v2942 = vpop.permute.xlu0 %2941
    %2943 = vset.pattern.permute.xlu0 0
    %2944 = vperm.xlu0 %2943, %v2795
    %v2945 = vpop.permute.xlu0 %2944
    %2946 = vset.pattern.permute.xlu0 0
    %2947 = vperm.xlu0 %2946, %v2796
    %v2948 = vpop.permute.xlu0 %2947
    %2949 = vset.pattern.permute.xlu0 0
    %2950 = vperm.xlu0 %2949, %v2797
    %v2951 = vpop.permute.xlu0 %2950
    %2952 = vset.pattern.permute.xlu0 0
    %2953 = vperm.xlu0 %2952, %v2798
    %v2954 = vpop.permute.xlu0 %2953
    %2955 = vset.pattern.permute.xlu0 0
    %2956 = vperm.xlu0 %2955, %v2799
    %v2957 = vpop.permute.xlu0 %2956
    %2958 = vset.pattern.permute.xlu0 0
    %2959 = vperm.xlu0 %2958, %v2800
    %v2960 = vpop.permute.xlu0 %2959
    %2961 = vset.pattern.permute.xlu0 0
    %2962 = vperm.xlu0 %2961, %v2801
    %v2963 = vpop.permute.xlu0 %2962
    %2964 = vset.pattern.permute.xlu0 0
    %2965 = vperm.xlu0 %2964, %v2802
    %v2966 = vpop.permute.xlu0 %2965
    %2967 = vset.pattern.permute.xlu0 0
    %2968 = vperm.xlu0 %2967, %v2803
    %v2969 = vpop.permute.xlu0 %2968
    %2970 = vset.pattern.permute.xlu0 0
    %2971 = vperm.xlu0 %2970, %v2804
    %v2972 = vpop.permute.xlu0 %2971
    %2973 = vset.pattern.permute.xlu0 0
    %2974 = vperm.xlu0 %2973, %v2805
    %v2975 = vpop.permute.xlu0 %2974
    %2976 = vset.pattern.permute.xlu0 0
    %2977 = vperm.xlu0 %2976, %v2806
    %v2978 = vpop.permute.xlu0 %2977
    %2979 = vset.pattern.permute.xlu0 0
    %2980 = vperm.xlu0 %2979, %v2807
    %v2981 = vpop.permute.xlu0 %2980
    %2982 = vset.pattern.permute.xlu0 0
    %2983 = vperm.xlu0 %2982, %v2808
    %v2984 = vpop.permute.xlu0 %2983
    %2985 = vset.pattern.permute.xlu0 0
    %2986 = vperm.xlu0 %2985, %v2809
    %v2987 = vpop.permute.xlu0 %2986
    %2988 = vset.pattern.permute.xlu0 0
    %2989 = vperm.xlu0 %2988, %v2810
    %v2990 = vpop.permute.xlu0 %2989
    %2991 = vset.pattern.permute.xlu0 0
    %2992 = vperm.xlu0 %2991, %v2811
    %v2993 = vpop.permute.xlu0 %2992
    %2994 = vset.pattern.permute.xlu0 0
    %2995 = vperm.xlu0 %2994, %v2812
    %v2996 = vpop.permute.xlu0 %2995
    %2997 = vset.pattern.permute.xlu0 0
    %2998 = vperm.xlu0 %2997, %v2813
    %v2999 = vpop.permute.xlu0 %2998
    %3000 = vset.pattern.permute.xlu0 0
    %3001 = vperm.xlu0 %3000, %v2814
    %v3002 = vpop.permute.xlu0 %3001
    %3003 = vset.pattern.permute.xlu0 0
    %3004 = vperm.xlu0 %3003, %v2815
    %v3005 = vpop.permute.xlu0 %3004
    %3006 = vset.pattern.permute.xlu0 0
    %3007 = vperm.xlu0 %3006, %v2816
    %v3008 = vpop.permute.xlu0 %3007
    %3009 = vset.pattern.permute.xlu0 0
    %3010 = vperm.xlu0 %3009, %v2817
    %v3011 = vpop.permute.xlu0 %3010
    %3012 = vset.pattern.permute.xlu0 0
    %3013 = vperm.xlu0 %3012, %v2818
    %v3014 = vpop.permute.xlu0 %3013
    %3015 = vset.pattern.permute.xlu0 0
    %3016 = vperm.xlu0 %3015, %v2819
    %v3017 = vpop.permute.xlu0 %3016
    %3018 = vset.pattern.permute.xlu0 0
    %3019 = vperm.xlu0 %3018, %v2820
    %v3020 = vpop.permute.xlu0 %3019
    %v3021 = vlaneseq
    %v3022 = vshrl.u32 %v3021, 7
    %v3023 = vsub.s32 %v22, %v3022
    %v3024 = vrot.slane %v2879, %v3023
    %v3025 = vadd.s32 %v22, 4294967288
    %v3026 = vlaneseq
    %v3027 = vshrl.u32 %v3026, 7
    %v3028 = vsub.s32 %v3025, %v3027
    %v3029 = vrot.slane %v2882, %v3028
    %vm3030 = vcmask 130112
    %v3031 = vsel %vm3030, %v3029, %v3024
    %v3032 = vadd.s32 %v22, 4294967280
    %v3033 = vlaneseq
    %v3034 = vshrl.u32 %v3033, 7
    %v3035 = vsub.s32 %v3032, %v3034
    %v3036 = vrot.slane %v2885, %v3035
    %vm3037 = vcmask 195712
    %v3038 = vsel %vm3037, %v3036, %v3031
    %v3039 = vadd.s32 %v22, 4294967272
    %v3040 = vlaneseq
    %v3041 = vshrl.u32 %v3040, 7
    %v3042 = vsub.s32 %v3039, %v3041
    %v3043 = vrot.slane %v2888, %v3042
    %vm3044 = vcmask 261312
    %v3045 = vsel %vm3044, %v3043, %v3038
    %v3046 = vadd.s32 %v22, 4294967264
    %v3047 = vlaneseq
    %v3048 = vshrl.u32 %v3047, 7
    %v3049 = vsub.s32 %v3046, %v3048
    %v3050 = vrot.slane %v2891, %v3049
    %vm3051 = vcmask 326912
    %v3052 = vsel %vm3051, %v3050, %v3045
    %v3053 = vadd.s32 %v22, 4294967256
    %v3054 = vlaneseq
    %v3055 = vshrl.u32 %v3054, 7
    %v3056 = vsub.s32 %v3053, %v3055
    %v3057 = vrot.slane %v2894, %v3056
    %vm3058 = vcmask 392512
    %v3059 = vsel %vm3058, %v3057, %v3052
    %v3060 = vadd.s32 %v22, 4294967248
    %v3061 = vlaneseq
    %v3062 = vshrl.u32 %v3061, 7
    %v3063 = vsub.s32 %v3060, %v3062
    %v3064 = vrot.slane %v2897, %v3063
    %vm3065 = vcmask 458112
    %v3066 = vsel %vm3065, %v3064, %v3059
    %v3067 = vadd.s32 %v22, 4294967240
    %v3068 = vlaneseq
    %v3069 = vshrl.u32 %v3068, 7
    %v3070 = vsub.s32 %v3067, %v3069
    %v3071 = vrot.slane %v2900, %v3070
    %vm3072 = vcmask 523712
    %v3073 = vsel %vm3072, %v3071, %v3066
    %v3074 = vadd.s32 %v22, 4294967232
    %v3075 = vlaneseq
    %v3076 = vshrl.u32 %v3075, 7
    %v3077 = vsub.s32 %v3074, %v3076
    %v3078 = vrot.slane %v2903, %v3077
    %vm3079 = vcmask 589312
    %v3080 = vsel %vm3079, %v3078, %v3073
    %v3081 = vadd.s32 %v22, 4294967224
    %v3082 = vlaneseq
    %v3083 = vshrl.u32 %v3082, 7
    %v3084 = vsub.s32 %v3081, %v3083
    %v3085 = vrot.slane %v2906, %v3084
    %vm3086 = vcmask 654912
    %v3087 = vsel %vm3086, %v3085, %v3080
    %v3088 = vadd.s32 %v22, 4294967216
    %v3089 = vlaneseq
    %v3090 = vshrl.u32 %v3089, 7
    %v3091 = vsub.s32 %v3088, %v3090
    %v3092 = vrot.slane %v2909, %v3091
    %vm3093 = vcmask 720512
    %v3094 = vsel %vm3093, %v3092, %v3087
    %v3095 = vadd.s32 %v22, 4294967208
    %v3096 = vlaneseq
    %v3097 = vshrl.u32 %v3096, 7
    %v3098 = vsub.s32 %v3095, %v3097
    %v3099 = vrot.slane %v2912, %v3098
    %vm3100 = vcmask 786112
    %v3101 = vsel %vm3100, %v3099, %v3094
    %v3102 = vadd.s32 %v22, 4294967200
    %v3103 = vlaneseq
    %v3104 = vshrl.u32 %v3103, 7
    %v3105 = vsub.s32 %v3102, %v3104
    %v3106 = vrot.slane %v2915, %v3105
    %vm3107 = vcmask 851712
    %v3108 = vsel %vm3107, %v3106, %v3101
    %v3109 = vadd.s32 %v22, 4294967192
    %v3110 = vlaneseq
    %v3111 = vshrl.u32 %v3110, 7
    %v3112 = vsub.s32 %v3109, %v3111
    %v3113 = vrot.slane %v2918, %v3112
    %vm3114 = vcmask 917312
    %v3115 = vsel %vm3114, %v3113, %v3108
    %v3116 = vadd.s32 %v22, 4294967184
    %v3117 = vlaneseq
    %v3118 = vshrl.u32 %v3117, 7
    %v3119 = vsub.s32 %v3116, %v3118
    %v3120 = vrot.slane %v2921, %v3119
    %vm3121 = vcmask 982912
    %v3122 = vsel %vm3121, %v3120, %v3115
    %v3123 = vadd.s32 %v22, 4294967176
    %v3124 = vlaneseq
    %v3125 = vshrl.u32 %v3124, 7
    %v3126 = vsub.s32 %v3123, %v3125
    %v3127 = vrot.slane %v2924, %v3126
    %vm3128 = vcmask 1048512
    %v3129 = vsel %vm3128, %v3127, %v3122
    %v3130 = vlaneseq
    %v3131 = vshrl.u32 %v3130, 7
    %v3132 = vsub.s32 %v22, %v3131
    %v3133 = vrot.slane %v2927, %v3132
    %v3134 = vlaneseq
    %v3135 = vshrl.u32 %v3134, 7
    %v3136 = vsub.s32 %v3025, %v3135
    %v3137 = vrot.slane %v2930, %v3136
    %v3138 = vsel %vm3030, %v3137, %v3133
    %v3139 = vlaneseq
    %v3140 = vshrl.u32 %v3139, 7
    %v3141 = vsub.s32 %v3032, %v3140
    %v3142 = vrot.slane %v2933, %v3141
    %v3143 = vsel %vm3037, %v3142, %v3138
    %v3144 = vlaneseq
    %v3145 = vshrl.u32 %v3144, 7
    %v3146 = vsub.s32 %v3039, %v3145
    %v3147 = vrot.slane %v2936, %v3146
    %v3148 = vsel %vm3044, %v3147, %v3143
    %v3149 = vlaneseq
    %v3150 = vshrl.u32 %v3149, 7
    %v3151 = vsub.s32 %v3046, %v3150
    %v3152 = vrot.slane %v2939, %v3151
    %v3153 = vsel %vm3051, %v3152, %v3148
    %v3154 = vlaneseq
    %v3155 = vshrl.u32 %v3154, 7
    %v3156 = vsub.s32 %v3053, %v3155
    %v3157 = vrot.slane %v2942, %v3156
    %v3158 = vsel %vm3058, %v3157, %v3153
    %v3159 = vlaneseq
    %v3160 = vshrl.u32 %v3159, 7
    %v3161 = vsub.s32 %v3060, %v3160
    %v3162 = vrot.slane %v2945, %v3161
    %v3163 = vsel %vm3065, %v3162, %v3158
    %v3164 = vlaneseq
    %v3165 = vshrl.u32 %v3164, 7
    %v3166 = vsub.s32 %v3067, %v3165
    %v3167 = vrot.slane %v2948, %v3166
    %v3168 = vsel %vm3072, %v3167, %v3163
    %v3169 = vlaneseq
    %v3170 = vshrl.u32 %v3169, 7
    %v3171 = vsub.s32 %v3074, %v3170
    %v3172 = vrot.slane %v2951, %v3171
    %v3173 = vsel %vm3079, %v3172, %v3168
    %v3174 = vlaneseq
    %v3175 = vshrl.u32 %v3174, 7
    %v3176 = vsub.s32 %v3081, %v3175
    %v3177 = vrot.slane %v2954, %v3176
    %v3178 = vsel %vm3086, %v3177, %v3173
    %v3179 = vlaneseq
    %v3180 = vshrl.u32 %v3179, 7
    %v3181 = vsub.s32 %v3088, %v3180
    %v3182 = vrot.slane %v2957, %v3181
    %v3183 = vsel %vm3093, %v3182, %v3178
    %v3184 = vlaneseq
    %v3185 = vshrl.u32 %v3184, 7
    %v3186 = vsub.s32 %v3095, %v3185
    %v3187 = vrot.slane %v2960, %v3186
    %v3188 = vsel %vm3100, %v3187, %v3183
    %v3189 = vlaneseq
    %v3190 = vshrl.u32 %v3189, 7
    %v3191 = vsub.s32 %v3102, %v3190
    %v3192 = vrot.slane %v2963, %v3191
    %v3193 = vsel %vm3107, %v3192, %v3188
    %v3194 = vlaneseq
    %v3195 = vshrl.u32 %v3194, 7
    %v3196 = vsub.s32 %v3109, %v3195
    %v3197 = vrot.slane %v2966, %v3196
    %v3198 = vsel %vm3114, %v3197, %v3193
    %v3199 = vlaneseq
    %v3200 = vshrl.u32 %v3199, 7
    %v3201 = vsub.s32 %v3116, %v3200
    %v3202 = vrot.slane %v2969, %v3201
    %v3203 = vsel %vm3121, %v3202, %v3198
    %v3204 = vlaneseq
    %v3205 = vshrl.u32 %v3204, 7
    %v3206 = vsub.s32 %v3123, %v3205
    %v3207 = vrot.slane %v2972, %v3206
    %v3208 = vsel %vm3128, %v3207, %v3203
    %v3209 = vlaneseq
    %v3210 = vshrl.u32 %v3209, 7
    %v3211 = vsub.s32 %v22, %v3210
    %v3212 = vrot.slane %v2975, %v3211
    %v3213 = vlaneseq
    %v3214 = vshrl.u32 %v3213, 7
    %v3215 = vsub.s32 %v3025, %v3214
    %v3216 = vrot.slane %v2978, %v3215
    %v3217 = vsel %vm3030, %v3216, %v3212
    %v3218 = vlaneseq
    %v3219 = vshrl.u32 %v3218, 7
    %v3220 = vsub.s32 %v3032, %v3219
    %v3221 = vrot.slane %v2981, %v3220
    %v3222 = vsel %vm3037, %v3221, %v3217
    %v3223 = vlaneseq
    %v3224 = vshrl.u32 %v3223, 7
    %v3225 = vsub.s32 %v3039, %v3224
    %v3226 = vrot.slane %v2984, %v3225
    %v3227 = vsel %vm3044, %v3226, %v3222
    %v3228 = vlaneseq
    %v3229 = vshrl.u32 %v3228, 7
    %v3230 = vsub.s32 %v3046, %v3229
    %v3231 = vrot.slane %v2987, %v3230
    %v3232 = vsel %vm3051, %v3231, %v3227
    %v3233 = vlaneseq
    %v3234 = vshrl.u32 %v3233, 7
    %v3235 = vsub.s32 %v3053, %v3234
    %v3236 = vrot.slane %v2990, %v3235
    %v3237 = vsel %vm3058, %v3236, %v3232
    %v3238 = vlaneseq
    %v3239 = vshrl.u32 %v3238, 7
    %v3240 = vsub.s32 %v3060, %v3239
    %v3241 = vrot.slane %v2993, %v3240
    %v3242 = vsel %vm3065, %v3241, %v3237
    %v3243 = vlaneseq
    %v3244 = vshrl.u32 %v3243, 7
    %v3245 = vsub.s32 %v3067, %v3244
    %v3246 = vrot.slane %v2996, %v3245
    %v3247 = vsel %vm3072, %v3246, %v3242
    %v3248 = vlaneseq
    %v3249 = vshrl.u32 %v3248, 7
    %v3250 = vsub.s32 %v3074, %v3249
    %v3251 = vrot.slane %v2999, %v3250
    %v3252 = vsel %vm3079, %v3251, %v3247
    %v3253 = vlaneseq
    %v3254 = vshrl.u32 %v3253, 7
    %v3255 = vsub.s32 %v3081, %v3254
    %v3256 = vrot.slane %v3002, %v3255
    %v3257 = vsel %vm3086, %v3256, %v3252
    %v3258 = vlaneseq
    %v3259 = vshrl.u32 %v3258, 7
    %v3260 = vsub.s32 %v3088, %v3259
    %v3261 = vrot.slane %v3005, %v3260
    %v3262 = vsel %vm3093, %v3261, %v3257
    %v3263 = vlaneseq
    %v3264 = vshrl.u32 %v3263, 7
    %v3265 = vsub.s32 %v3095, %v3264
    %v3266 = vrot.slane %v3008, %v3265
    %v3267 = vsel %vm3100, %v3266, %v3262
    %v3268 = vlaneseq
    %v3269 = vshrl.u32 %v3268, 7
    %v3270 = vsub.s32 %v3102, %v3269
    %v3271 = vrot.slane %v3011, %v3270
    %v3272 = vsel %vm3107, %v3271, %v3267
    %v3273 = vlaneseq
    %v3274 = vshrl.u32 %v3273, 7
    %v3275 = vsub.s32 %v3109, %v3274
    %v3276 = vrot.slane %v3014, %v3275
    %v3277 = vsel %vm3114, %v3276, %v3272
    %v3278 = vlaneseq
    %v3279 = vshrl.u32 %v3278, 7
    %v3280 = vsub.s32 %v3116, %v3279
    %v3281 = vrot.slane %v3017, %v3280
    %v3282 = vsel %vm3121, %v3281, %v3277
    %v3283 = vlaneseq
    %v3284 = vshrl.u32 %v3283, 7
    %v3285 = vsub.s32 %v3123, %v3284
    %v3286 = vrot.slane %v3020, %v3285
    %v3287 = vsel %vm3128, %v3286, %v3282
    %vm3288 = vcmask 1041409
    %v3289 = vsel %vm3288, %v3208, %v3129
    %vm3290 = vcmask 1042434
    %v3291 = vsel %vm3290, %v3287, %v3289
    %v3293 = vsel %vm2828, %v3291, 0.0
    %vm3294 = vcmask 1042432
    %v3295 = vsel %vm3294, %v3293, 0.0
    %3296 = vadd.xlane.f32.xlu0 %v3295
    %v3297 = vpop.xlane.xlu0 %3296
    %v3298 = vrot.slane %v3297, 4
    %v3299 = vadd.f32 %v3297, %v3298
    %v3300 = vrot.slane %v3299, 2
    %v3301 = vadd.f32 %v3299, %v3300
    %v3302 = vrot.slane %v3301, 1
    %v3303 = vadd.f32 %v3301, %v3302
    %s3304 = vtos %v3303
    %v3305 = vstv %s3304
    %vm3306 = vcmask 0
    %3307 = vst.msk [vmem:[#allocation2] sm:$0x1] %vm3306, %v3305
    // Predicated region
    $region22: #{tpu_custom_call.1} parent=1 // pred_check
      _
    $region23: #{tpu_custom_call.1} parent=1 // pred_check_branch
      %3309 = sbr.rel (0) target = $region25
    $region24: #{tpu_custom_call.1} parent=1 // pred_region
      %s3311 = ssub.s32 16, 16
      %3312 = vsyncadd [#allocation3], %s3311
      %s3314 = sshll.u32 [#allocation2], 4
      %s3315 = int_to_ptr.vmem [resolvable:$true] %s3314
      %3317 = dma.vmem_to_hbm [thread:$0]  %s3315, 16, %s5, [#allocation3]
    $region25: #{tpu_custom_call.1} parent=1 // pred_fallthru
      _
    // Predicated region
    $region26: #{tpu_custom_call.1} parent=1 // pred_check
      _
    $region27: #{tpu_custom_call.1} parent=1 // pred_check_branch
      %3319 = sbr.rel (0) target = $region29
    $region28: #{tpu_custom_call.1} parent=1 // pred_region
      %3320 = dma.done [#allocation3], 16
    $region29: #{tpu_custom_call.1} parent=1 // pred_fallthru
      _
    %3321 = vsyncpa [#allocation3], 1

</llo_original>
